<compile_context>
chip_gen: v7x
topology: tpu7x:2x2x1
jax: 0.10.0
libtpu: 0.0.40
codegen_flags: <defaults>
</compile_context>

<pallas_src>
import jax
import jax.numpy as jnp
from jax.experimental import pallas as pl
from jax.experimental.pallas import tpu as pltpu


def _round_up(x, m):
    return (x + m - 1) // m * m


def _cdiv(a, b):
    return -(-a // b)


def mlp_kernel(x_ref, w1_ref, b1_ref, w2_ref, b2_ref, w3_ref, b3_ref, o_ref):
    # Weights arrive pre-scaled by 2 (folded at prep time) and already bf16;
    # biases are pre-scaled f32.  MXU: bf16 x bf16 -> f32 accumulation.
    # Bias-add + tanh stay f32 (EUP); a bf16 activation path could be gated
    # per-generation if EUP ever binds at very large tiles on v6e/v7x.
    x = x_ref[...].astype(jnp.bfloat16)
    h = jnp.tanh(jnp.dot(x, w1_ref[...],
                         preferred_element_type=jnp.float32) + b1_ref[...])
    h = jnp.tanh(jnp.dot(h.astype(jnp.bfloat16), w2_ref[...],
                         preferred_element_type=jnp.float32) + b2_ref[...])
    y = jnp.tanh(jnp.dot(h.astype(jnp.bfloat16), w3_ref[...],
                         preferred_element_type=jnp.float32) + b3_ref[...])
    # Output feature dim is padded to a multiple of 128 -> unmasked,
    # lane-dense stores.
    o_ref[...] = y.astype(o_ref.dtype)


def prepare_params(w1, b1, w2, b2, w3, b3):
    """One-time parameter transform (do at init, NOT per forward call):
    fold the 2.0 activation scale into W/b, zero-pad the H and D_out feature
    dims to multiples of 128 (vreg lane width), and cast weights to bf16 for
    the MXU.  The D_in dim of W1 is NOT padded, so x needs no per-call pad.
    Biases stay f32 so the bias-add + tanh path is f32 on every generation."""
    d_in, h = w1.shape
    d_out = w3.shape[1]
    h_p, d_out_p = _round_up(h, 128), _round_up(d_out, 128)

    def prep(w, b, rows_p, out_p):
        w = jnp.pad(2.0 * w, ((0, rows_p - w.shape[0]), (0, out_p - w.shape[1])))
        b = jnp.pad(2.0 * b, ((0, 0), (0, out_p - b.shape[1])))
        return w.astype(jnp.bfloat16), b.astype(jnp.float32)

    w1p, b1p = prep(w1, b1, d_in, h_p)     # input dim left at D_in on purpose
    w2p, b2p = prep(w2, b2, h_p, h_p)
    w3p, b3p = prep(w3, b3, h_p, d_out_p)
    return (w1p, b1p, w2p, b2p, w3p, b3p), d_out


def _vmem_capacity_bytes():
    """Physical per-TensorCore VMEM; conservative fallback if the query fails."""
    try:
        return int(pltpu.get_tpu_info().vmem_capacity_bytes)
    except Exception:
        return 64 << 20  # smallest physical VMEM across v5e/v6e/v7x (per TC)


def _plan(n, d_in, h_p, d_out_p):
    """Return (tile_n, buffer_weights_once, vmem_limit_bytes).

    * Largest batch tile that fits the VMEM budget -> minimal grid steps;
      a single step whenever the whole batch fits.
    * If >1 step is needed, round the step count up to an even number so the
      'parallel' batch axis fills both v7x TensorCores.
    * Single-buffer the grid-invariant weights (pl.Buffered(1)) only when
      their double-buffered footprint would eat a large share of VMEM.
    * Explicit vmem_limit_bytes sized from the real physical VMEM of the
      current generation (raises v5e's 16 MiB default scoped limit, stays
      inside v7x's 64 MiB physical).
    """
    physical = _vmem_capacity_bytes()
    vmem_limit = min(physical * 3 // 4, 100 << 20)
    budget = min(physical // 2, 64 << 20)

    # Per-batch-row VMEM bytes: double-buffered f32 x and y tiles, bf16 copy
    # of x, two hidden activations (f32 + bf16 each), f32 y before the cast.
    per_row = 10 * d_in + 12 * h_p + 12 * d_out_p
    # Grid-invariant weights (bf16) + biases (f32, padded to 8 sublanes).
    weights = 2 * (d_in * h_p + h_p * h_p + h_p * d_out_p) \
        + 4 * 8 * (2 * h_p + d_out_p)
    buffer_weights_once = 2 * weights > budget // 2
    fixed = weights if buffer_weights_once else 2 * weights

    avail = max(budget - fixed, 8 * per_row)
    tile_cap = max(8, (avail // per_row) // 8 * 8)
    if tile_cap >= n:
        # Single grid step; tile_n == full batch dim (allowed even if n % 8 != 0).
        return n, buffer_weights_once, vmem_limit

    steps = _round_up(_cdiv(n, tile_cap), 2)   # even -> fills both v7x TCs
    tile_n = _round_up(_cdiv(n, steps), 8)
    return tile_n, buffer_weights_once, vmem_limit


def two_layer_net(x, params, d_out, *, tile_n=None, slice_output=True):
    """Forward pass. `params` must come from prepare_params()."""
    w1, b1, w2, b2, w3, b3 = params
    n, d_in = x.shape
    assert w1.shape[0] == d_in, "x feature dim must match prepared W1"
    h_p = w1.shape[1]
    d_out_p = w3.shape[1]

    auto_tile, buffer_once, vmem_limit = _plan(n, d_in, h_p, d_out_p)
    if tile_n is None:
        tile_n = auto_tile
    grid = (_cdiv(n, tile_n),)

    # Grid-invariant weights/biases: constant index_map keeps them VMEM
    # resident across grid steps.  At large H, single-buffer them so the
    # default double-buffering does not blow the VMEM budget.
    wkw = {"pipeline_mode": pl.Buffered(1)} if buffer_once else {}

    y_pad = pl.pallas_call(
        mlp_kernel,
        out_shape=jax.ShapeDtypeStruct((n, d_out_p), x.dtype),
        grid_spec=pltpu.PrefetchScalarGridSpec(
            num_scalar_prefetch=0,
            grid=grid,
            in_specs=[
                # x batch tile: last block dim == full D_in (allowed even when
                # D_in is not a multiple of 128) -> NO per-call pad of x.
                pl.BlockSpec((tile_n, d_in), lambda i: (i, 0)),
                pl.BlockSpec((d_in, h_p), lambda i: (0, 0), **wkw),     # W1
                pl.BlockSpec((1, h_p), lambda i: (0, 0), **wkw),        # b1
                pl.BlockSpec((h_p, h_p), lambda i: (0, 0), **wkw),      # W2
                pl.BlockSpec((1, h_p), lambda i: (0, 0), **wkw),        # b2
                pl.BlockSpec((h_p, d_out_p), lambda i: (0, 0), **wkw),  # W3
                pl.BlockSpec((1, d_out_p), lambda i: (0, 0), **wkw),    # b3
            ],
            out_specs=pl.BlockSpec((tile_n, d_out_p), lambda i: (i, 0)),
        ),
        compiler_params=pltpu.CompilerParams(
            dimension_semantics=("parallel",),   # batch tiles shard across TCs
            vmem_limit_bytes=vmem_limit,
        ),
    )(x, w1, b1, w2, b2, w3, b3)

    # When n % tile_n != 0 the final block's out-of-range rows are handled by
    # Pallas edge-block masking on writeback; valid rows are always correct.
    if slice_output:
        # This slice is one extra HBM pass over the output; consumers that can
        # use the 128-padded block directly should pass slice_output=False.
        return y_pad[:, :d_out]
    return y_pad


def init_linear_params(key, fan_in, fan_out, dtype=jnp.float32):
    # PyTorch nn.Linear default init: U(-1/sqrt(fan_in), 1/sqrt(fan_in));
    # stored transposed as [fan_in, fan_out].
    kw, kb = jax.random.split(key)
    bound = 1.0 / jnp.sqrt(fan_in)
    w = jax.random.uniform(kw, (fan_in, fan_out), dtype, -bound, bound)
    b = jax.random.uniform(kb, (1, fan_out), dtype, -bound, bound)
    return w, b


if __name__ == "__main__":
    # N x D_in -> H -> H -> D_out.  At these sizes _plan() picks a single
    # grid step (tile_n = N), per the perf review.
    N, D_in, H, D_out = 512, 32, 64, 16

    key = jax.random.PRNGKey(0)
    kx, k1, k2, k3 = jax.random.split(key, 4)

    x = jax.random.normal(kx, (N, D_in), jnp.float32)
    w1, b1 = init_linear_params(k1, D_in, H)
    w2, b2 = init_linear_params(k2, H, H)
    w3, b3 = init_linear_params(k3, H, D_out)

    # One-time parameter transform (fold 2.0 scale, pad H/D_out to 128, bf16).
    params, d_out = prepare_params(w1, b1, w2, b2, w3, b3)

    y = two_layer_net(x, params, d_out)
    y = jax.block_until_ready(y)

    # Pure-JAX f32 reference of the original module semantics.
    h_ref = jnp.tanh(2.0 * (x @ w1 + b1))
    h_ref = jnp.tanh(2.0 * (h_ref @ w2 + b2))
    y_ref = jnp.tanh(2.0 * (h_ref @ w3 + b3))
    assert y.shape == (N, D_out)
    # bf16 MXU inputs (f32 accumulation) -> looser tolerance than pure f32.
    assert jnp.allclose(y, y_ref, atol=2e-2, rtol=2e-2), "mismatch vs reference"

    print("KERNEL_OK")
</pallas_src>

<mosaic_0001>
module attributes {stable_mosaic.version = 11 : i64} {
  func.func @mlp_kernel(%arg0: i32, %arg1: memref<512x32xf32, #tpu.memory_space<vmem>>, %arg2: memref<32x128xbf16, #tpu.memory_space<vmem>>, %arg3: memref<1x128xf32, #tpu.memory_space<vmem>>, %arg4: memref<128x128xbf16, #tpu.memory_space<vmem>>, %arg5: memref<1x128xf32, #tpu.memory_space<vmem>>, %arg6: memref<128x128xbf16, #tpu.memory_space<vmem>>, %arg7: memref<1x128xf32, #tpu.memory_space<vmem>>, %arg8: memref<512x128xf32, #tpu.memory_space<vmem>>) attributes {dimension_semantics = [#tpu.dimension_semantics<parallel>], iteration_bounds = array<i64: 1>, scalar_prefetch = 0 : i64, scratch_operands = 0 : i64, tpu.core_type = #tpu.core_type<tc>, window_params = [{transform_indices = @transform_0, window_bounds = array<i64: 512, 32>}, {pipeline_mode = #tpu.pipeline_mode<synchronous>, transform_indices = @transform_1, window_bounds = array<i64: 32, 128>}, {pipeline_mode = #tpu.pipeline_mode<synchronous>, transform_indices = @transform_2, window_bounds = array<i64: 1, 128>}, {pipeline_mode = #tpu.pipeline_mode<synchronous>, transform_indices = @transform_3, window_bounds = array<i64: 128, 128>}, {pipeline_mode = #tpu.pipeline_mode<synchronous>, transform_indices = @transform_4, window_bounds = array<i64: 1, 128>}, {pipeline_mode = #tpu.pipeline_mode<synchronous>, transform_indices = @transform_5, window_bounds = array<i64: 128, 128>}, {pipeline_mode = #tpu.pipeline_mode<synchronous>, transform_indices = @transform_6, window_bounds = array<i64: 1, 128>}, {transform_indices = @transform_7, window_bounds = array<i64: 512, 128>}]} {
    %c0 = arith.constant 0 : index
    %c0_0 = arith.constant 0 : index
    %0 = vector.load %arg1[%c0, %c0_0] : memref<512x32xf32, #tpu.memory_space<vmem>>, vector<512x32xf32>
    %1 = arith.truncf %0 : vector<512x32xf32> to vector<512x32xbf16>
    %c0_1 = arith.constant 0 : index
    %c0_2 = arith.constant 0 : index
    %2 = vector.load %arg2[%c0_1, %c0_2] : memref<32x128xbf16, #tpu.memory_space<vmem>>, vector<32x128xbf16>
    %cst = arith.constant dense<0.000000e+00> : vector<512x128xf32>
    %3 = tpu.matmul %1, %2, %cst {dimension_numbers = #tpu.dot_dimension_numbers<[1], [0], [0], [1], [0, 0, 1, 1], [], []>} : vector<512x32xbf16>, vector<32x128xbf16>, vector<512x128xf32> -> vector<512x128xf32>
    %c0_3 = arith.constant 0 : index
    %c0_4 = arith.constant 0 : index
    %4 = vector.load %arg3[%c0_3, %c0_4] : memref<1x128xf32, #tpu.memory_space<vmem>>, vector<1x128xf32>
    %5 = vector.broadcast %4 : vector<1x128xf32> to vector<512x128xf32>
    %6 = arith.addf %3, %5 : vector<512x128xf32>
    %7 = math.tanh %6 : vector<512x128xf32>
    %8 = arith.truncf %7 : vector<512x128xf32> to vector<512x128xbf16>
    %c0_5 = arith.constant 0 : index
    %c0_6 = arith.constant 0 : index
    %9 = vector.load %arg4[%c0_5, %c0_6] : memref<128x128xbf16, #tpu.memory_space<vmem>>, vector<128x128xbf16>
    %cst_7 = arith.constant dense<0.000000e+00> : vector<512x128xf32>
    %10 = tpu.matmul %8, %9, %cst_7 {dimension_numbers = #tpu.dot_dimension_numbers<[1], [0], [0], [1], [0, 0, 1, 1], [], []>} : vector<512x128xbf16>, vector<128x128xbf16>, vector<512x128xf32> -> vector<512x128xf32>
    %c0_8 = arith.constant 0 : index
    %c0_9 = arith.constant 0 : index
    %11 = vector.load %arg5[%c0_8, %c0_9] : memref<1x128xf32, #tpu.memory_space<vmem>>, vector<1x128xf32>
    %12 = vector.broadcast %11 : vector<1x128xf32> to vector<512x128xf32>
    %13 = arith.addf %10, %12 : vector<512x128xf32>
    %14 = math.tanh %13 : vector<512x128xf32>
    %15 = arith.truncf %14 : vector<512x128xf32> to vector<512x128xbf16>
    %c0_10 = arith.constant 0 : index
    %c0_11 = arith.constant 0 : index
    %16 = vector.load %arg6[%c0_10, %c0_11] : memref<128x128xbf16, #tpu.memory_space<vmem>>, vector<128x128xbf16>
    %cst_12 = arith.constant dense<0.000000e+00> : vector<512x128xf32>
    %17 = tpu.matmul %15, %16, %cst_12 {dimension_numbers = #tpu.dot_dimension_numbers<[1], [0], [0], [1], [0, 0, 1, 1], [], []>} : vector<512x128xbf16>, vector<128x128xbf16>, vector<512x128xf32> -> vector<512x128xf32>
    %c0_13 = arith.constant 0 : index
    %c0_14 = arith.constant 0 : index
    %18 = vector.load %arg7[%c0_13, %c0_14] : memref<1x128xf32, #tpu.memory_space<vmem>>, vector<1x128xf32>
    %19 = vector.broadcast %18 : vector<1x128xf32> to vector<512x128xf32>
    %20 = arith.addf %17, %19 : vector<512x128xf32>
    %21 = math.tanh %20 : vector<512x128xf32>
    %c0_15 = arith.constant 0 : index
    %c0_16 = arith.constant 0 : index
    %22 = vector.load %arg8[%c0_15, %c0_16] : memref<512x128xf32, #tpu.memory_space<vmem>>, vector<512x128xf32>
    tpu.vector_store %arg8[%c0_15, %c0_16], %21 {strides = array<i32>} : memref<512x128xf32, #tpu.memory_space<vmem>>, vector<512x128xf32>,
    return
  }
  func.func @transform_0(%arg0: i32) -> (i32, i32) {
    %c0_i32 = arith.constant 0 : i32
    %c0_i32_0 = arith.constant 0 : i32
    return %arg0, %c0_i32 : i32, i32
  }
  func.func @transform_1(%arg0: i32) -> (i32, i32) {
    %c0_i32 = arith.constant 0 : i32
    %c0_i32_0 = arith.constant 0 : i32
    %c0_i32_1 = arith.constant 0 : i32
    return %c0_i32, %c0_i32_0 : i32, i32
  }
  func.func @transform_2(%arg0: i32) -> (i32, i32) {
    %c0_i32 = arith.constant 0 : i32
    %c0_i32_0 = arith.constant 0 : i32
    %c0_i32_1 = arith.constant 0 : i32
    return %c0_i32, %c0_i32_0 : i32, i32
  }
  func.func @transform_3(%arg0: i32) -> (i32, i32) {
    %c0_i32 = arith.constant 0 : i32
    %c0_i32_0 = arith.constant 0 : i32
    %c0_i32_1 = arith.constant 0 : i32
    return %c0_i32, %c0_i32_0 : i32, i32
  }
  func.func @transform_4(%arg0: i32) -> (i32, i32) {
    %c0_i32 = arith.constant 0 : i32
    %c0_i32_0 = arith.constant 0 : i32
    %c0_i32_1 = arith.constant 0 : i32
    return %c0_i32, %c0_i32_0 : i32, i32
  }
  func.func @transform_5(%arg0: i32) -> (i32, i32) {
    %c0_i32 = arith.constant 0 : i32
    %c0_i32_0 = arith.constant 0 : i32
    %c0_i32_1 = arith.constant 0 : i32
    return %c0_i32, %c0_i32_0 : i32, i32
  }
  func.func @transform_6(%arg0: i32) -> (i32, i32) {
    %c0_i32 = arith.constant 0 : i32
    %c0_i32_0 = arith.constant 0 : i32
    %c0_i32_1 = arith.constant 0 : i32
    return %c0_i32, %c0_i32_0 : i32, i32
  }
  func.func @transform_7(%arg0: i32) -> (i32, i32) {
    %c0_i32 = arith.constant 0 : i32
    %c0_i32_0 = arith.constant 0 : i32
    return %arg0, %c0_i32 : i32, i32
  }
}

</mosaic_0001>

<llo_original>
// kernel: tpu_custom_call.1
$region0: #{tpu_custom_call.1}
  #allocation0 [shape = 'u32[]', space=smem, size = 0x4, offset = 0x4, fixed_abs, tag = 'smem constant byte address 0x4 - core index']
  #allocation1 [shape = 'u32[144,128]{1,0:T(1,128)}', space=vmem, size = 0x12000, scoped, tag = 'internal scratch']
  %s0 = inlined_call_operand.vmem [shape: f32[512,32], index: 0, kind: input, shape index: {}]
  %s1 = inlined_call_operand.vmem [shape: bf16[32,128], index: 1, kind: input, shape index: {}]
  %s2 = inlined_call_operand.vmem [shape: f32[1,128], index: 2, kind: input, shape index: {}]
  %s3 = inlined_call_operand.vmem [shape: bf16[128,128], index: 3, kind: input, shape index: {}]
  %s4 = inlined_call_operand.vmem [shape: f32[1,128], index: 4, kind: input, shape index: {}]
  %s5 = inlined_call_operand.vmem [shape: bf16[128,128], index: 5, kind: input, shape index: {}]
  %s6 = inlined_call_operand.vmem [shape: f32[1,128], index: 6, kind: input, shape index: {}]
  %s7 = inlined_call_operand.hbm [shape: f32[512,128], index: 7, kind: output, shape index: {}]
  %s8 = sld [smem:[#allocation0]]
  $region38: #{tpu_custom_call.1} parent=0
    _
  %s10 = ssub.s32 1, %s8
  %s11 = scalar_select 0, %s10, %s8
  $region1: #{tpu_custom_call.1} parent=0
    #allocation2 [shape = 'u8[262144]{0}', space=vmem, size = 0x40000, scoped, tag = 'output window, operand 0, single buffered']
    #allocation3 [shape = 's32[1]{0}', space=sflag, size = 0x4, scoped, tag = 'scoped memory for tpu_custom_call.1']
    %12 = vsyncpa [#allocation3], 0
    // Predicated region
    $region2: #{tpu_custom_call.1} parent=1 // pred_check
      _
    $region3: #{tpu_custom_call.1} parent=1 // pred_check_branch
      %14 = sbr.rel (0) target = $region5
    $region4: #{tpu_custom_call.1} parent=1 // pred_region
      _
    $region5: #{tpu_custom_call.1} parent=1 // pred_fallthru
      _
    // Predicated region
    $region6: #{tpu_custom_call.1} parent=1 // pred_check
      _
    $region7: #{tpu_custom_call.1} parent=1 // pred_check_branch
      %16 = sbr.rel (0) target = $region9
    $region8: #{tpu_custom_call.1} parent=1 // pred_region
      _
    $region9: #{tpu_custom_call.1} parent=1 // pred_fallthru
      _
    // Predicated region
    $region10: #{tpu_custom_call.1} parent=1 // pred_check
      _
    $region11: #{tpu_custom_call.1} parent=1 // pred_check_branch
      %18 = sbr.rel (0) target = $region13
    $region12: #{tpu_custom_call.1} parent=1 // pred_region
      _
    $region13: #{tpu_custom_call.1} parent=1 // pred_fallthru
      _
    // Predicated region
    $region14: #{tpu_custom_call.1} parent=1 // pred_check
      _
    $region15: #{tpu_custom_call.1} parent=1 // pred_check_branch
      %20 = sbr.rel (0) target = $region17
    $region16: #{tpu_custom_call.1} parent=1 // pred_region
      _
    $region17: #{tpu_custom_call.1} parent=1 // pred_fallthru
      _
    // Predicated region
    $region18: #{tpu_custom_call.1} parent=1 // pred_check
      _
    $region19: #{tpu_custom_call.1} parent=1 // pred_check_branch
      %22 = sbr.rel (0) target = $region21
    $region20: #{tpu_custom_call.1} parent=1 // pred_region
      _
    $region21: #{tpu_custom_call.1} parent=1 // pred_fallthru
      _
    // Predicated region
    $region22: #{tpu_custom_call.1} parent=1 // pred_check
      _
    $region23: #{tpu_custom_call.1} parent=1 // pred_check_branch
      %24 = sbr.rel (0) target = $region25
    $region24: #{tpu_custom_call.1} parent=1 // pred_region
      _
    $region25: #{tpu_custom_call.1} parent=1 // pred_fallthru
      _
    // Predicated region
    $region26: #{tpu_custom_call.1} parent=1 // pred_check
      _
    $region27: #{tpu_custom_call.1} parent=1 // pred_check_branch
      %26 = sbr.rel (0) target = $region29
    $region28: #{tpu_custom_call.1} parent=1 // pred_region
      _
    $region29: #{tpu_custom_call.1} parent=1 // pred_fallthru
      _
    %v28 = vld [vmem:[%s0] sm:$0xff]
    %v29 = vld [vmem:[%s0 + $0x8] sm:$0xff]
    %v30 = vld [vmem:[%s0 + $0x10] sm:$0xff]
    %v31 = vld [vmem:[%s0 + $0x18] sm:$0xff]
    %v32 = vld [vmem:[%s0 + $0x20] sm:$0xff]
    %v33 = vld [vmem:[%s0 + $0x28] sm:$0xff]
    %v34 = vld [vmem:[%s0 + $0x30] sm:$0xff]
    %v35 = vld [vmem:[%s0 + $0x38] sm:$0xff]
    %v36 = vld [vmem:[%s0 + $0x40] sm:$0xff]
    %v37 = vld [vmem:[%s0 + $0x48] sm:$0xff]
    %v38 = vld [vmem:[%s0 + $0x50] sm:$0xff]
    %v39 = vld [vmem:[%s0 + $0x58] sm:$0xff]
    %v40 = vld [vmem:[%s0 + $0x60] sm:$0xff]
    %v41 = vld [vmem:[%s0 + $0x68] sm:$0xff]
    %v42 = vld [vmem:[%s0 + $0x70] sm:$0xff]
    %v43 = vld [vmem:[%s0 + $0x78] sm:$0xff]
    %v44 = vld [vmem:[%s0 + $0x80] sm:$0xff]
    %v45 = vld [vmem:[%s0 + $0x88] sm:$0xff]
    %v46 = vld [vmem:[%s0 + $0x90] sm:$0xff]
    %v47 = vld [vmem:[%s0 + $0x98] sm:$0xff]
    %v48 = vld [vmem:[%s0 + $0xa0] sm:$0xff]
    %v49 = vld [vmem:[%s0 + $0xa8] sm:$0xff]
    %v50 = vld [vmem:[%s0 + $0xb0] sm:$0xff]
    %v51 = vld [vmem:[%s0 + $0xb8] sm:$0xff]
    %v52 = vld [vmem:[%s0 + $0xc0] sm:$0xff]
    %v53 = vld [vmem:[%s0 + $0xc8] sm:$0xff]
    %v54 = vld [vmem:[%s0 + $0xd0] sm:$0xff]
    %v55 = vld [vmem:[%s0 + $0xd8] sm:$0xff]
    %v56 = vld [vmem:[%s0 + $0xe0] sm:$0xff]
    %v57 = vld [vmem:[%s0 + $0xe8] sm:$0xff]
    %v58 = vld [vmem:[%s0 + $0xf0] sm:$0xff]
    %v59 = vld [vmem:[%s0 + $0xf8] sm:$0xff]
    %v60 = vld [vmem:[%s0 + $0x100] sm:$0xff]
    %v61 = vld [vmem:[%s0 + $0x108] sm:$0xff]
    %v62 = vld [vmem:[%s0 + $0x110] sm:$0xff]
    %v63 = vld [vmem:[%s0 + $0x118] sm:$0xff]
    %v64 = vld [vmem:[%s0 + $0x120] sm:$0xff]
    %v65 = vld [vmem:[%s0 + $0x128] sm:$0xff]
    %v66 = vld [vmem:[%s0 + $0x130] sm:$0xff]
    %v67 = vld [vmem:[%s0 + $0x138] sm:$0xff]
    %v68 = vld [vmem:[%s0 + $0x140] sm:$0xff]
    %v69 = vld [vmem:[%s0 + $0x148] sm:$0xff]
    %v70 = vld [vmem:[%s0 + $0x150] sm:$0xff]
    %v71 = vld [vmem:[%s0 + $0x158] sm:$0xff]
    %v72 = vld [vmem:[%s0 + $0x160] sm:$0xff]
    %v73 = vld [vmem:[%s0 + $0x168] sm:$0xff]
    %v74 = vld [vmem:[%s0 + $0x170] sm:$0xff]
    %v75 = vld [vmem:[%s0 + $0x178] sm:$0xff]
    %v76 = vld [vmem:[%s0 + $0x180] sm:$0xff]
    %v77 = vld [vmem:[%s0 + $0x188] sm:$0xff]
    %v78 = vld [vmem:[%s0 + $0x190] sm:$0xff]
    %v79 = vld [vmem:[%s0 + $0x198] sm:$0xff]
    %v80 = vld [vmem:[%s0 + $0x1a0] sm:$0xff]
    %v81 = vld [vmem:[%s0 + $0x1a8] sm:$0xff]
    %v82 = vld [vmem:[%s0 + $0x1b0] sm:$0xff]
    %v83 = vld [vmem:[%s0 + $0x1b8] sm:$0xff]
    %v84 = vld [vmem:[%s0 + $0x1c0] sm:$0xff]
    %v85 = vld [vmem:[%s0 + $0x1c8] sm:$0xff]
    %v86 = vld [vmem:[%s0 + $0x1d0] sm:$0xff]
    %v87 = vld [vmem:[%s0 + $0x1d8] sm:$0xff]
    %v88 = vld [vmem:[%s0 + $0x1e0] sm:$0xff]
    %v89 = vld [vmem:[%s0 + $0x1e8] sm:$0xff]
    %v90 = vld [vmem:[%s0 + $0x1f0] sm:$0xff]
    %v91 = vld [vmem:[%s0 + $0x1f8] sm:$0xff]
    %v92 = vpack.c.bf16 %v29, %v28
    %v93 = vpack.c.bf16 %v31, %v30
    %v94 = vpack.c.bf16 %v33, %v32
    %v95 = vpack.c.bf16 %v35, %v34
    %v96 = vpack.c.bf16 %v37, %v36
    %v97 = vpack.c.bf16 %v39, %v38
    %v98 = vpack.c.bf16 %v41, %v40
    %v99 = vpack.c.bf16 %v43, %v42
    %v100 = vpack.c.bf16 %v45, %v44
    %v101 = vpack.c.bf16 %v47, %v46
    %v102 = vpack.c.bf16 %v49, %v48
    %v103 = vpack.c.bf16 %v51, %v50
    %v104 = vpack.c.bf16 %v53, %v52
    %v105 = vpack.c.bf16 %v55, %v54
    %v106 = vpack.c.bf16 %v57, %v56
    %v107 = vpack.c.bf16 %v59, %v58
    %v108 = vpack.c.bf16 %v61, %v60
    %v109 = vpack.c.bf16 %v63, %v62
    %v110 = vpack.c.bf16 %v65, %v64
    %v111 = vpack.c.bf16 %v67, %v66
    %v112 = vpack.c.bf16 %v69, %v68
    %v113 = vpack.c.bf16 %v71, %v70
    %v114 = vpack.c.bf16 %v73, %v72
    %v115 = vpack.c.bf16 %v75, %v74
    %v116 = vpack.c.bf16 %v77, %v76
    %v117 = vpack.c.bf16 %v79, %v78
    %v118 = vpack.c.bf16 %v81, %v80
    %v119 = vpack.c.bf16 %v83, %v82
    %v120 = vpack.c.bf16 %v85, %v84
    %v121 = vpack.c.bf16 %v87, %v86
    %v122 = vpack.c.bf16 %v89, %v88
    %v123 = vpack.c.bf16 %v91, %v90
    %v124 = vld [vmem:[%s1] sm:$0xf]
    %v125 = vld [vmem:[%s1 + $0x4] sm:$0xf]
    %v126 = vld [vmem:[%s1 + $0x8] sm:$0xf]
    %v127 = vld [vmem:[%s1 + $0xc] sm:$0xf]
    %v128 = vld [vmem:[%s2] sm:$0x1]
    %v130 = vlaneseq
    %v131 = vshrl.u32 %v130, 7
    %v132 = vsub.s32 0, %v131
    %v133 = vrot.slane %v128, %v132
    %v139 = vunpack.c.l.b16 %v124
    %v140 = vunpack.c.l.b16 %v125
    %v141 = vunpack.c.l.b16 %v126
    %v142 = vunpack.c.l.b16 %v127
    %v143 = vpack.c.b16 %v140, %v139
    %v144 = vpack.c.b16 %v142, %v141
    %vm147 = vcmask 261120
    %v149 = vsel %vm147, %v92, 0
    %v152 = vsel %vm147, %v93, 0
    %v155 = vsel %vm147, %v94, 0
    %v158 = vsel %vm147, %v95, 0
    %v161 = vsel %vm147, %v96, 0
    %v164 = vsel %vm147, %v97, 0
    %v167 = vsel %vm147, %v98, 0
    %v170 = vsel %vm147, %v99, 0
    %v173 = vsel %vm147, %v100, 0
    %v176 = vsel %vm147, %v101, 0
    %v179 = vsel %vm147, %v102, 0
    %v182 = vsel %vm147, %v103, 0
    %v185 = vsel %vm147, %v104, 0
    %v188 = vsel %vm147, %v105, 0
    %v191 = vsel %vm147, %v106, 0
    %v194 = vsel %vm147, %v107, 0
    %v197 = vsel %vm147, %v108, 0
    %v200 = vsel %vm147, %v109, 0
    %v203 = vsel %vm147, %v110, 0
    %v206 = vsel %vm147, %v111, 0
    %v209 = vsel %vm147, %v112, 0
    %v212 = vsel %vm147, %v113, 0
    %v215 = vsel %vm147, %v114, 0
    %v218 = vsel %vm147, %v115, 0
    %v221 = vsel %vm147, %v116, 0
    %v224 = vsel %vm147, %v117, 0
    %v227 = vsel %vm147, %v118, 0
    %v230 = vsel %vm147, %v119, 0
    %v233 = vsel %vm147, %v120, 0
    %v236 = vsel %vm147, %v121, 0
    %v239 = vsel %vm147, %v122, 0
    %v242 = vsel %vm147, %v123, 0
    %244 = vmatprep.subr.bf16.mxu0 0
    %245 = vmatpush1.bf16.msra.mxu0 %v143
    %246 = vmatprep.subr.bf16.mxu0 0
    %247 = vmatpush1.bf16.msra.mxu0 %v144
    %248 = vmatprep.subr.bf16.mxu0 0
    %249 = vmatpush1.bf16.msra.mxu0 0
    %250 = vmatprep.subr.bf16.mxu0 0
    %251 = vmatpush1.bf16.msra.mxu0 0
    %252 = vmatprep.subr.bf16.mxu0 0
    %253 = vmatpush1.bf16.msra.mxu0 0
    %254 = vmatprep.subr.bf16.mxu0 0
    %255 = vmatpush1.bf16.msra.mxu0 0
    %256 = vmatprep.subr.bf16.mxu0 0
    %257 = vmatpush1.bf16.msra.mxu0 0
    %258 = vmatprep.subr.bf16.mxu0 0
    %259 = vmatpush1.bf16.msra.mxu0 0
    %260 = vmatprep.subr.bf16.mxu0 0
    %261 = vmatpush1.bf16.msra.mxu0 0
    %262 = vmatprep.subr.bf16.mxu0 0
    %263 = vmatpush1.bf16.msra.mxu0 0
    %264 = vmatprep.subr.bf16.mxu0 0
    %265 = vmatpush1.bf16.msra.mxu0 0
    %266 = vmatprep.subr.bf16.mxu0 0
    %267 = vmatpush1.bf16.msra.mxu0 0
    %268 = vmatprep.subr.bf16.mxu0 0
    %269 = vmatpush1.bf16.msra.mxu0 0
    %270 = vmatprep.subr.bf16.mxu0 0
    %271 = vmatpush1.bf16.msra.mxu0 0
    %272 = vmatprep.subr.bf16.mxu0 0
    %273 = vmatpush1.bf16.msra.mxu0 0
    %274 = vmatprep.subr.bf16.mxu0 0
    %275 = vmatpush1.bf16.msra.mxu0 0
    %276 = vmatprep.mubr.bf16.mxu0 0
    %277 = vmatmul.mubr.bf16.gmra.mrb[0].mxu0 %v149
    %v278 = vpop.f32.mrb[0].mxu0
    %v279 = vadd.f32 %v133, %v278
    %v280 = vpop.f32.mrb[0].mxu0
    %v281 = vpop.f32.mrb[0].mxu0
    %v282 = vadd.f32 %v133, %v281
    %v283 = vpop.f32.mrb[0].mxu0
    %284 = vmatprep.mubr.bf16.mxu0 0
    %285 = vmatmul.mubr.bf16.gmra.mrb[0].mxu0 %v152
    %v286 = vpop.f32.mrb[0].mxu0
    %v287 = vadd.f32 %v133, %v286
    %v288 = vpop.f32.mrb[0].mxu0
    %v289 = vpop.f32.mrb[0].mxu0
    %v290 = vadd.f32 %v133, %v289
    %v291 = vpop.f32.mrb[0].mxu0
    %292 = vmatprep.mubr.bf16.mxu0 0
    %293 = vmatmul.mubr.bf16.gmra.mrb[0].mxu0 %v155
    %v294 = vpop.f32.mrb[0].mxu0
    %v295 = vadd.f32 %v133, %v294
    %v296 = vpop.f32.mrb[0].mxu0
    %v297 = vpop.f32.mrb[0].mxu0
    %v298 = vadd.f32 %v133, %v297
    %v299 = vpop.f32.mrb[0].mxu0
    %300 = vmatprep.mubr.bf16.mxu0 0
    %301 = vmatmul.mubr.bf16.gmra.mrb[0].mxu0 %v158
    %v302 = vpop.f32.mrb[0].mxu0
    %v303 = vadd.f32 %v133, %v302
    %v304 = vpop.f32.mrb[0].mxu0
    %v305 = vpop.f32.mrb[0].mxu0
    %v306 = vadd.f32 %v133, %v305
    %v307 = vpop.f32.mrb[0].mxu0
    %308 = vmatprep.mubr.bf16.mxu0 0
    %309 = vmatmul.mubr.bf16.gmra.mrb[0].mxu0 %v161
    %v310 = vpop.f32.mrb[0].mxu0
    %v311 = vadd.f32 %v133, %v310
    %v312 = vpop.f32.mrb[0].mxu0
    %v313 = vpop.f32.mrb[0].mxu0
    %v314 = vadd.f32 %v133, %v313
    %v315 = vpop.f32.mrb[0].mxu0
    %316 = vmatprep.mubr.bf16.mxu0 0
    %317 = vmatmul.mubr.bf16.gmra.mrb[0].mxu0 %v164
    %v318 = vpop.f32.mrb[0].mxu0
    %v319 = vadd.f32 %v133, %v318
    %v320 = vpop.f32.mrb[0].mxu0
    %v321 = vpop.f32.mrb[0].mxu0
    %v322 = vadd.f32 %v133, %v321
    %v323 = vpop.f32.mrb[0].mxu0
    %324 = vmatprep.mubr.bf16.mxu0 0
    %325 = vmatmul.mubr.bf16.gmra.mrb[0].mxu0 %v167
    %v326 = vpop.f32.mrb[0].mxu0
    %v327 = vadd.f32 %v133, %v326
    %v328 = vpop.f32.mrb[0].mxu0
    %v329 = vpop.f32.mrb[0].mxu0
    %v330 = vadd.f32 %v133, %v329
    %v331 = vpop.f32.mrb[0].mxu0
    %332 = vmatprep.mubr.bf16.mxu0 0
    %333 = vmatmul.mubr.bf16.gmra.mrb[0].mxu0 %v170
    %v334 = vpop.f32.mrb[0].mxu0
    %v335 = vadd.f32 %v133, %v334
    %v336 = vpop.f32.mrb[0].mxu0
    %v337 = vpop.f32.mrb[0].mxu0
    %v338 = vadd.f32 %v133, %v337
    %v339 = vpop.f32.mrb[0].mxu0
    %340 = vmatprep.mubr.bf16.mxu0 0
    %341 = vmatmul.mubr.bf16.gmra.mrb[0].mxu0 %v173
    %v342 = vpop.f32.mrb[0].mxu0
    %v343 = vadd.f32 %v133, %v342
    %v344 = vpop.f32.mrb[0].mxu0
    %v345 = vpop.f32.mrb[0].mxu0
    %v346 = vadd.f32 %v133, %v345
    %v347 = vpop.f32.mrb[0].mxu0
    %348 = vmatprep.mubr.bf16.mxu0 0
    %349 = vmatmul.mubr.bf16.gmra.mrb[0].mxu0 %v176
    %v350 = vpop.f32.mrb[0].mxu0
    %v351 = vadd.f32 %v133, %v350
    %v352 = vpop.f32.mrb[0].mxu0
    %v353 = vpop.f32.mrb[0].mxu0
    %v354 = vadd.f32 %v133, %v353
    %v355 = vpop.f32.mrb[0].mxu0
    %356 = vmatprep.mubr.bf16.mxu0 0
    %357 = vmatmul.mubr.bf16.gmra.mrb[0].mxu0 %v179
    %v358 = vpop.f32.mrb[0].mxu0
    %v359 = vadd.f32 %v133, %v358
    %v360 = vpop.f32.mrb[0].mxu0
    %v361 = vpop.f32.mrb[0].mxu0
    %v362 = vadd.f32 %v133, %v361
    %v363 = vpop.f32.mrb[0].mxu0
    %364 = vmatprep.mubr.bf16.mxu0 0
    %365 = vmatmul.mubr.bf16.gmra.mrb[0].mxu0 %v182
    %v366 = vpop.f32.mrb[0].mxu0
    %v367 = vadd.f32 %v133, %v366
    %v368 = vpop.f32.mrb[0].mxu0
    %v369 = vpop.f32.mrb[0].mxu0
    %v370 = vadd.f32 %v133, %v369
    %v371 = vpop.f32.mrb[0].mxu0
    %372 = vmatprep.mubr.bf16.mxu0 0
    %373 = vmatmul.mubr.bf16.gmra.mrb[0].mxu0 %v185
    %v374 = vpop.f32.mrb[0].mxu0
    %v375 = vadd.f32 %v133, %v374
    %v376 = vpop.f32.mrb[0].mxu0
    %v377 = vpop.f32.mrb[0].mxu0
    %v378 = vadd.f32 %v133, %v377
    %v379 = vpop.f32.mrb[0].mxu0
    %380 = vmatprep.mubr.bf16.mxu0 0
    %381 = vmatmul.mubr.bf16.gmra.mrb[0].mxu0 %v188
    %v382 = vpop.f32.mrb[0].mxu0
    %v383 = vadd.f32 %v133, %v382
    %v384 = vpop.f32.mrb[0].mxu0
    %v385 = vpop.f32.mrb[0].mxu0
    %v386 = vadd.f32 %v133, %v385
    %v387 = vpop.f32.mrb[0].mxu0
    %388 = vmatprep.mubr.bf16.mxu0 0
    %389 = vmatmul.mubr.bf16.gmra.mrb[0].mxu0 %v191
    %v390 = vpop.f32.mrb[0].mxu0
    %v391 = vadd.f32 %v133, %v390
    %v392 = vpop.f32.mrb[0].mxu0
    %v393 = vpop.f32.mrb[0].mxu0
    %v394 = vadd.f32 %v133, %v393
    %v395 = vpop.f32.mrb[0].mxu0
    %396 = vmatprep.mubr.bf16.mxu0 0
    %397 = vmatmul.mubr.bf16.gmra.mrb[0].mxu0 %v194
    %v398 = vpop.f32.mrb[0].mxu0
    %v399 = vadd.f32 %v133, %v398
    %v400 = vpop.f32.mrb[0].mxu0
    %v401 = vpop.f32.mrb[0].mxu0
    %v402 = vadd.f32 %v133, %v401
    %v403 = vpop.f32.mrb[0].mxu0
    %404 = vmatprep.mubr.bf16.mxu0 0
    %405 = vmatmul.mubr.bf16.gmra.mrb[0].mxu0 %v197
    %v406 = vpop.f32.mrb[0].mxu0
    %v407 = vadd.f32 %v133, %v406
    %v408 = vpop.f32.mrb[0].mxu0
    %v409 = vpop.f32.mrb[0].mxu0
    %v410 = vadd.f32 %v133, %v409
    %v411 = vpop.f32.mrb[0].mxu0
    %412 = vmatprep.mubr.bf16.mxu0 0
    %413 = vmatmul.mubr.bf16.gmra.mrb[0].mxu0 %v200
    %v414 = vpop.f32.mrb[0].mxu0
    %v415 = vadd.f32 %v133, %v414
    %v416 = vpop.f32.mrb[0].mxu0
    %v417 = vpop.f32.mrb[0].mxu0
    %v418 = vadd.f32 %v133, %v417
    %v419 = vpop.f32.mrb[0].mxu0
    %420 = vmatprep.mubr.bf16.mxu0 0
    %421 = vmatmul.mubr.bf16.gmra.mrb[0].mxu0 %v203
    %v422 = vpop.f32.mrb[0].mxu0
    %v423 = vadd.f32 %v133, %v422
    %v424 = vpop.f32.mrb[0].mxu0
    %v425 = vpop.f32.mrb[0].mxu0
    %v426 = vadd.f32 %v133, %v425
    %v427 = vpop.f32.mrb[0].mxu0
    %428 = vmatprep.mubr.bf16.mxu0 0
    %429 = vmatmul.mubr.bf16.gmra.mrb[0].mxu0 %v206
    %v430 = vpop.f32.mrb[0].mxu0
    %v431 = vadd.f32 %v133, %v430
    %v432 = vpop.f32.mrb[0].mxu0
    %v433 = vpop.f32.mrb[0].mxu0
    %v434 = vadd.f32 %v133, %v433
    %v435 = vpop.f32.mrb[0].mxu0
    %436 = vmatprep.mubr.bf16.mxu0 0
    %437 = vmatmul.mubr.bf16.gmra.mrb[0].mxu0 %v209
    %v438 = vpop.f32.mrb[0].mxu0
    %v439 = vadd.f32 %v133, %v438
    %v440 = vpop.f32.mrb[0].mxu0
    %v441 = vpop.f32.mrb[0].mxu0
    %v442 = vadd.f32 %v133, %v441
    %v443 = vpop.f32.mrb[0].mxu0
    %444 = vmatprep.mubr.bf16.mxu0 0
    %445 = vmatmul.mubr.bf16.gmra.mrb[0].mxu0 %v212
    %v446 = vpop.f32.mrb[0].mxu0
    %v447 = vadd.f32 %v133, %v446
    %v448 = vpop.f32.mrb[0].mxu0
    %v449 = vpop.f32.mrb[0].mxu0
    %v450 = vadd.f32 %v133, %v449
    %v451 = vpop.f32.mrb[0].mxu0
    %452 = vmatprep.mubr.bf16.mxu0 0
    %453 = vmatmul.mubr.bf16.gmra.mrb[0].mxu0 %v215
    %v454 = vpop.f32.mrb[0].mxu0
    %v455 = vadd.f32 %v133, %v454
    %v456 = vpop.f32.mrb[0].mxu0
    %v457 = vpop.f32.mrb[0].mxu0
    %v458 = vadd.f32 %v133, %v457
    %v459 = vpop.f32.mrb[0].mxu0
    %460 = vmatprep.mubr.bf16.mxu0 0
    %461 = vmatmul.mubr.bf16.gmra.mrb[0].mxu0 %v218
    %v462 = vpop.f32.mrb[0].mxu0
    %v463 = vadd.f32 %v133, %v462
    %v464 = vpop.f32.mrb[0].mxu0
    %v465 = vpop.f32.mrb[0].mxu0
    %v466 = vadd.f32 %v133, %v465
    %v467 = vpop.f32.mrb[0].mxu0
    %468 = vmatprep.mubr.bf16.mxu0 0
    %469 = vmatmul.mubr.bf16.gmra.mrb[0].mxu0 %v221
    %v470 = vpop.f32.mrb[0].mxu0
    %v471 = vadd.f32 %v133, %v470
    %v472 = vpop.f32.mrb[0].mxu0
    %v473 = vpop.f32.mrb[0].mxu0
    %v474 = vadd.f32 %v133, %v473
    %v475 = vpop.f32.mrb[0].mxu0
    %476 = vmatprep.mubr.bf16.mxu0 0
    %477 = vmatmul.mubr.bf16.gmra.mrb[0].mxu0 %v224
    %v478 = vpop.f32.mrb[0].mxu0
    %v479 = vadd.f32 %v133, %v478
    %v480 = vpop.f32.mrb[0].mxu0
    %v481 = vpop.f32.mrb[0].mxu0
    %v482 = vadd.f32 %v133, %v481
    %v483 = vpop.f32.mrb[0].mxu0
    %484 = vmatprep.mubr.bf16.mxu0 0
    %485 = vmatmul.mubr.bf16.gmra.mrb[0].mxu0 %v227
    %v486 = vpop.f32.mrb[0].mxu0
    %v487 = vadd.f32 %v133, %v486
    %v488 = vpop.f32.mrb[0].mxu0
    %v489 = vpop.f32.mrb[0].mxu0
    %v490 = vadd.f32 %v133, %v489
    %v491 = vpop.f32.mrb[0].mxu0
    %492 = vmatprep.mubr.bf16.mxu0 0
    %493 = vmatmul.mubr.bf16.gmra.mrb[0].mxu0 %v230
    %v494 = vpop.f32.mrb[0].mxu0
    %v495 = vadd.f32 %v133, %v494
    %v496 = vpop.f32.mrb[0].mxu0
    %v497 = vpop.f32.mrb[0].mxu0
    %v498 = vadd.f32 %v133, %v497
    %v499 = vpop.f32.mrb[0].mxu0
    %500 = vmatprep.mubr.bf16.mxu0 0
    %501 = vmatmul.mubr.bf16.gmra.mrb[0].mxu0 %v233
    %v502 = vpop.f32.mrb[0].mxu0
    %v503 = vadd.f32 %v133, %v502
    %v504 = vpop.f32.mrb[0].mxu0
    %v505 = vpop.f32.mrb[0].mxu0
    %v506 = vadd.f32 %v133, %v505
    %v507 = vpop.f32.mrb[0].mxu0
    %508 = vmatprep.mubr.bf16.mxu0 0
    %509 = vmatmul.mubr.bf16.gmra.mrb[0].mxu0 %v236
    %v510 = vpop.f32.mrb[0].mxu0
    %v511 = vadd.f32 %v133, %v510
    %v512 = vpop.f32.mrb[0].mxu0
    %v513 = vpop.f32.mrb[0].mxu0
    %v514 = vadd.f32 %v133, %v513
    %v515 = vpop.f32.mrb[0].mxu0
    %516 = vmatprep.mubr.bf16.mxu0 0
    %517 = vmatmul.mubr.bf16.gmra.mrb[0].mxu0 %v239
    %v518 = vpop.f32.mrb[0].mxu0
    %v519 = vadd.f32 %v133, %v518
    %v520 = vpop.f32.mrb[0].mxu0
    %v521 = vpop.f32.mrb[0].mxu0
    %v522 = vadd.f32 %v133, %v521
    %v523 = vpop.f32.mrb[0].mxu0
    %524 = vmatprep.mubr.bf16.mxu0 0
    %525 = vmatmul.mubr.bf16.gmra.mrb[0].mxu0 %v242
    %v526 = vpop.f32.mrb[0].mxu0
    %v527 = vadd.f32 %v133, %v526
    %v528 = vpop.f32.mrb[0].mxu0
    %v529 = vpop.f32.mrb[0].mxu0
    %v530 = vadd.f32 %v133, %v529
    %v531 = vpop.f32.mrb[0].mxu0
    %532 = vdwg.mxu0
    %v533 = vtanh.pop %v279
    %v534 = vtanh.pop %v282
    %v535 = vtanh.pop %v287
    %v536 = vtanh.pop %v290
    %v537 = vtanh.pop %v295
    %v538 = vtanh.pop %v298
    %v539 = vtanh.pop %v303
    %v540 = vtanh.pop %v306
    %v541 = vtanh.pop %v311
    %v542 = vtanh.pop %v314
    %v543 = vtanh.pop %v319
    %v544 = vtanh.pop %v322
    %v545 = vtanh.pop %v327
    %v546 = vtanh.pop %v330
    %v547 = vtanh.pop %v335
    %v548 = vtanh.pop %v338
    %v549 = vtanh.pop %v343
    %v550 = vtanh.pop %v346
    %v551 = vtanh.pop %v351
    %v552 = vtanh.pop %v354
    %v553 = vtanh.pop %v359
    %v554 = vtanh.pop %v362
    %v555 = vtanh.pop %v367
    %v556 = vtanh.pop %v370
    %v557 = vtanh.pop %v375
    %v558 = vtanh.pop %v378
    %v559 = vtanh.pop %v383
    %v560 = vtanh.pop %v386
    %v561 = vtanh.pop %v391
    %v562 = vtanh.pop %v394
    %v563 = vtanh.pop %v399
    %v564 = vtanh.pop %v402
    %v565 = vtanh.pop %v407
    %v566 = vtanh.pop %v410
    %v567 = vtanh.pop %v415
    %v568 = vtanh.pop %v418
    %v569 = vtanh.pop %v423
    %v570 = vtanh.pop %v426
    %v571 = vtanh.pop %v431
    %v572 = vtanh.pop %v434
    %v573 = vtanh.pop %v439
    %v574 = vtanh.pop %v442
    %v575 = vtanh.pop %v447
    %v576 = vtanh.pop %v450
    %v577 = vtanh.pop %v455
    %v578 = vtanh.pop %v458
    %v579 = vtanh.pop %v463
    %v580 = vtanh.pop %v466
    %v581 = vtanh.pop %v471
    %v582 = vtanh.pop %v474
    %v583 = vtanh.pop %v479
    %v584 = vtanh.pop %v482
    %v585 = vtanh.pop %v487
    %v586 = vtanh.pop %v490
    %v587 = vtanh.pop %v495
    %v588 = vtanh.pop %v498
    %v589 = vtanh.pop %v503
    %v590 = vtanh.pop %v506
    %v591 = vtanh.pop %v511
    %v592 = vtanh.pop %v514
    %v593 = vtanh.pop %v519
    %v594 = vtanh.pop %v522
    %v595 = vtanh.pop %v527
    %v596 = vtanh.pop %v530
    %v597 = vpack.c.bf16 %v534, %v533
    %v598 = vpack.c.bf16 %v536, %v535
    %v599 = vpack.c.bf16 %v538, %v537
    %v600 = vpack.c.bf16 %v540, %v539
    %v601 = vpack.c.bf16 %v542, %v541
    %v602 = vpack.c.bf16 %v544, %v543
    %v603 = vpack.c.bf16 %v546, %v545
    %v604 = vpack.c.bf16 %v548, %v547
    %v605 = vpack.c.bf16 %v550, %v549
    %v606 = vpack.c.bf16 %v552, %v551
    %v607 = vpack.c.bf16 %v554, %v553
    %v608 = vpack.c.bf16 %v556, %v555
    %v609 = vpack.c.bf16 %v558, %v557
    %v610 = vpack.c.bf16 %v560, %v559
    %v611 = vpack.c.bf16 %v562, %v561
    %v612 = vpack.c.bf16 %v564, %v563
    %v613 = vpack.c.bf16 %v566, %v565
    %v614 = vpack.c.bf16 %v568, %v567
    %v615 = vpack.c.bf16 %v570, %v569
    %v616 = vpack.c.bf16 %v572, %v571
    %v617 = vpack.c.bf16 %v574, %v573
    %v618 = vpack.c.bf16 %v576, %v575
    %v619 = vpack.c.bf16 %v578, %v577
    %v620 = vpack.c.bf16 %v580, %v579
    %v621 = vpack.c.bf16 %v582, %v581
    %v622 = vpack.c.bf16 %v584, %v583
    %v623 = vpack.c.bf16 %v586, %v585
    %v624 = vpack.c.bf16 %v588, %v587
    %v625 = vpack.c.bf16 %v590, %v589
    %v626 = vpack.c.bf16 %v592, %v591
    %v627 = vpack.c.bf16 %v594, %v593
    %v628 = vpack.c.bf16 %v596, %v595
    %v629 = vld [vmem:[%s3] sm:$0xf]
    %v630 = vld [vmem:[%s3 + $0x4] sm:$0xf]
    %v631 = vld [vmem:[%s3 + $0x8] sm:$0xf]
    %v632 = vld [vmem:[%s3 + $0xc] sm:$0xf]
    %v633 = vld [vmem:[%s3 + $0x10] sm:$0xf]
    %v634 = vld [vmem:[%s3 + $0x14] sm:$0xf]
    %v635 = vld [vmem:[%s3 + $0x18] sm:$0xf]
    %v636 = vld [vmem:[%s3 + $0x1c] sm:$0xf]
    %v637 = vld [vmem:[%s3 + $0x20] sm:$0xf]
    %v638 = vld [vmem:[%s3 + $0x24] sm:$0xf]
    %v639 = vld [vmem:[%s3 + $0x28] sm:$0xf]
    %v640 = vld [vmem:[%s3 + $0x2c] sm:$0xf]
    %v641 = vld [vmem:[%s3 + $0x30] sm:$0xf]
    %v642 = vld [vmem:[%s3 + $0x34] sm:$0xf]
    %v643 = vld [vmem:[%s3 + $0x38] sm:$0xf]
    %v644 = vld [vmem:[%s3 + $0x3c] sm:$0xf]
    %v645 = vld [vmem:[%s4] sm:$0x1]
    %v647 = vlaneseq
    %v648 = vshrl.u32 %v647, 7
    %v649 = vsub.s32 0, %v648
    %v650 = vrot.slane %v645, %v649
    %v668 = vunpack.c.l.b16 %v629
    %v669 = vunpack.c.l.b16 %v630
    %v670 = vunpack.c.l.b16 %v631
    %v671 = vunpack.c.l.b16 %v632
    %v672 = vunpack.c.l.b16 %v633
    %v673 = vunpack.c.l.b16 %v634
    %v674 = vunpack.c.l.b16 %v635
    %v675 = vunpack.c.l.b16 %v636
    %v676 = vunpack.c.l.b16 %v637
    %v677 = vunpack.c.l.b16 %v638
    %v678 = vunpack.c.l.b16 %v639
    %v679 = vunpack.c.l.b16 %v640
    %v680 = vunpack.c.l.b16 %v641
    %v681 = vunpack.c.l.b16 %v642
    %v682 = vunpack.c.l.b16 %v643
    %v683 = vunpack.c.l.b16 %v644
    %v684 = vpack.c.b16 %v669, %v668
    %v685 = vpack.c.b16 %v671, %v670
    %v686 = vpack.c.b16 %v673, %v672
    %v687 = vpack.c.b16 %v675, %v674
    %v688 = vpack.c.b16 %v677, %v676
    %v689 = vpack.c.b16 %v679, %v678
    %v690 = vpack.c.b16 %v681, %v680
    %v691 = vpack.c.b16 %v683, %v682
    %700 = vmatprep.subr.bf16.mxu0 0
    %701 = vmatpush1.bf16.msra.mxu0 %v684
    %702 = vmatprep.subr.bf16.mxu0 0
    %703 = vmatpush1.bf16.msra.mxu0 %v685
    %704 = vmatprep.subr.bf16.mxu0 0
    %705 = vmatpush1.bf16.msra.mxu0 %v686
    %706 = vmatprep.subr.bf16.mxu0 0
    %707 = vmatpush1.bf16.msra.mxu0 %v687
    %708 = vmatprep.subr.bf16.mxu0 0
    %709 = vmatpush1.bf16.msra.mxu0 %v688
    %710 = vmatprep.subr.bf16.mxu0 0
    %711 = vmatpush1.bf16.msra.mxu0 %v689
    %712 = vmatprep.subr.bf16.mxu0 0
    %713 = vmatpush1.bf16.msra.mxu0 %v690
    %714 = vmatprep.subr.bf16.mxu0 0
    %715 = vmatpush1.bf16.msra.mxu0 %v691
    %716 = vmatprep.subr.bf16.mxu0 0
    %717 = vmatpush1.bf16.msra.mxu0 0
    %718 = vmatprep.subr.bf16.mxu0 0
    %719 = vmatpush1.bf16.msra.mxu0 0
    %720 = vmatprep.subr.bf16.mxu0 0
    %721 = vmatpush1.bf16.msra.mxu0 0
    %722 = vmatprep.subr.bf16.mxu0 0
    %723 = vmatpush1.bf16.msra.mxu0 0
    %724 = vmatprep.subr.bf16.mxu0 0
    %725 = vmatpush1.bf16.msra.mxu0 0
    %726 = vmatprep.subr.bf16.mxu0 0
    %727 = vmatpush1.bf16.msra.mxu0 0
    %728 = vmatprep.subr.bf16.mxu0 0
    %729 = vmatpush1.bf16.msra.mxu0 0
    %730 = vmatprep.subr.bf16.mxu0 0
    %731 = vmatpush1.bf16.msra.mxu0 0
    %732 = vmatprep.mubr.bf16.mxu0 0
    %733 = vmatmul.mubr.bf16.gmra.mrb[0].mxu0 %v597
    %v734 = vpop.f32.mrb[0].mxu0
    %v735 = vadd.f32 %v650, %v734
    %v736 = vpop.f32.mrb[0].mxu0
    %v737 = vpop.f32.mrb[0].mxu0
    %v738 = vadd.f32 %v650, %v737
    %v739 = vpop.f32.mrb[0].mxu0
    %740 = vmatprep.mubr.bf16.mxu0 0
    %741 = vmatmul.mubr.bf16.gmra.mrb[0].mxu0 %v598
    %v742 = vpop.f32.mrb[0].mxu0
    %v743 = vadd.f32 %v650, %v742
    %v744 = vpop.f32.mrb[0].mxu0
    %v745 = vpop.f32.mrb[0].mxu0
    %v746 = vadd.f32 %v650, %v745
    %v747 = vpop.f32.mrb[0].mxu0
    %748 = vmatprep.mubr.bf16.mxu0 0
    %749 = vmatmul.mubr.bf16.gmra.mrb[0].mxu0 %v599
    %v750 = vpop.f32.mrb[0].mxu0
    %v751 = vadd.f32 %v650, %v750
    %v752 = vpop.f32.mrb[0].mxu0
    %v753 = vpop.f32.mrb[0].mxu0
    %v754 = vadd.f32 %v650, %v753
    %v755 = vpop.f32.mrb[0].mxu0
    %756 = vmatprep.mubr.bf16.mxu0 0
    %757 = vmatmul.mubr.bf16.gmra.mrb[0].mxu0 %v600
    %v758 = vpop.f32.mrb[0].mxu0
    %v759 = vadd.f32 %v650, %v758
    %v760 = vpop.f32.mrb[0].mxu0
    %v761 = vpop.f32.mrb[0].mxu0
    %v762 = vadd.f32 %v650, %v761
    %v763 = vpop.f32.mrb[0].mxu0
    %764 = vmatprep.mubr.bf16.mxu0 0
    %765 = vmatmul.mubr.bf16.gmra.mrb[0].mxu0 %v601
    %v766 = vpop.f32.mrb[0].mxu0
    %v767 = vadd.f32 %v650, %v766
    %v768 = vpop.f32.mrb[0].mxu0
    %v769 = vpop.f32.mrb[0].mxu0
    %v770 = vadd.f32 %v650, %v769
    %v771 = vpop.f32.mrb[0].mxu0
    %772 = vmatprep.mubr.bf16.mxu0 0
    %773 = vmatmul.mubr.bf16.gmra.mrb[0].mxu0 %v602
    %v774 = vpop.f32.mrb[0].mxu0
    %v775 = vadd.f32 %v650, %v774
    %v776 = vpop.f32.mrb[0].mxu0
    %v777 = vpop.f32.mrb[0].mxu0
    %v778 = vadd.f32 %v650, %v777
    %v779 = vpop.f32.mrb[0].mxu0
    %780 = vmatprep.mubr.bf16.mxu0 0
    %781 = vmatmul.mubr.bf16.gmra.mrb[0].mxu0 %v603
    %v782 = vpop.f32.mrb[0].mxu0
    %v783 = vadd.f32 %v650, %v782
    %v784 = vpop.f32.mrb[0].mxu0
    %v785 = vpop.f32.mrb[0].mxu0
    %v786 = vadd.f32 %v650, %v785
    %v787 = vpop.f32.mrb[0].mxu0
    %788 = vmatprep.mubr.bf16.mxu0 0
    %789 = vmatmul.mubr.bf16.gmra.mrb[0].mxu0 %v604
    %v790 = vpop.f32.mrb[0].mxu0
    %v791 = vadd.f32 %v650, %v790
    %v792 = vpop.f32.mrb[0].mxu0
    %v793 = vpop.f32.mrb[0].mxu0
    %v794 = vadd.f32 %v650, %v793
    %v795 = vpop.f32.mrb[0].mxu0
    %796 = vmatprep.mubr.bf16.mxu0 0
    %797 = vmatmul.mubr.bf16.gmra.mrb[0].mxu0 %v605
    %v798 = vpop.f32.mrb[0].mxu0
    %v799 = vadd.f32 %v650, %v798
    %v800 = vpop.f32.mrb[0].mxu0
    %v801 = vpop.f32.mrb[0].mxu0
    %v802 = vadd.f32 %v650, %v801
    %v803 = vpop.f32.mrb[0].mxu0
    %804 = vmatprep.mubr.bf16.mxu0 0
    %805 = vmatmul.mubr.bf16.gmra.mrb[0].mxu0 %v606
    %v806 = vpop.f32.mrb[0].mxu0
    %v807 = vadd.f32 %v650, %v806
    %v808 = vpop.f32.mrb[0].mxu0
    %v809 = vpop.f32.mrb[0].mxu0
    %v810 = vadd.f32 %v650, %v809
    %v811 = vpop.f32.mrb[0].mxu0
    %812 = vmatprep.mubr.bf16.mxu0 0
    %813 = vmatmul.mubr.bf16.gmra.mrb[0].mxu0 %v607
    %v814 = vpop.f32.mrb[0].mxu0
    %v815 = vadd.f32 %v650, %v814
    %v816 = vpop.f32.mrb[0].mxu0
    %v817 = vpop.f32.mrb[0].mxu0
    %v818 = vadd.f32 %v650, %v817
    %v819 = vpop.f32.mrb[0].mxu0
    %820 = vmatprep.mubr.bf16.mxu0 0
    %821 = vmatmul.mubr.bf16.gmra.mrb[0].mxu0 %v608
    %v822 = vpop.f32.mrb[0].mxu0
    %v823 = vadd.f32 %v650, %v822
    %v824 = vpop.f32.mrb[0].mxu0
    %v825 = vpop.f32.mrb[0].mxu0
    %v826 = vadd.f32 %v650, %v825
    %v827 = vpop.f32.mrb[0].mxu0
    %828 = vmatprep.mubr.bf16.mxu0 0
    %829 = vmatmul.mubr.bf16.gmra.mrb[0].mxu0 %v609
    %v830 = vpop.f32.mrb[0].mxu0
    %v831 = vadd.f32 %v650, %v830
    %v832 = vpop.f32.mrb[0].mxu0
    %v833 = vpop.f32.mrb[0].mxu0
    %v834 = vadd.f32 %v650, %v833
    %v835 = vpop.f32.mrb[0].mxu0
    %836 = vmatprep.mubr.bf16.mxu0 0
    %837 = vmatmul.mubr.bf16.gmra.mrb[0].mxu0 %v610
    %v838 = vpop.f32.mrb[0].mxu0
    %v839 = vadd.f32 %v650, %v838
    %v840 = vpop.f32.mrb[0].mxu0
    %v841 = vpop.f32.mrb[0].mxu0
    %v842 = vadd.f32 %v650, %v841
    %v843 = vpop.f32.mrb[0].mxu0
    %844 = vmatprep.mubr.bf16.mxu0 0
    %845 = vmatmul.mubr.bf16.gmra.mrb[0].mxu0 %v611
    %v846 = vpop.f32.mrb[0].mxu0
    %v847 = vadd.f32 %v650, %v846
    %v848 = vpop.f32.mrb[0].mxu0
    %v849 = vpop.f32.mrb[0].mxu0
    %v850 = vadd.f32 %v650, %v849
    %v851 = vpop.f32.mrb[0].mxu0
    %852 = vmatprep.mubr.bf16.mxu0 0
    %853 = vmatmul.mubr.bf16.gmra.mrb[0].mxu0 %v612
    %v854 = vpop.f32.mrb[0].mxu0
    %v855 = vadd.f32 %v650, %v854
    %v856 = vpop.f32.mrb[0].mxu0
    %v857 = vpop.f32.mrb[0].mxu0
    %v858 = vadd.f32 %v650, %v857
    %v859 = vpop.f32.mrb[0].mxu0
    %860 = vmatprep.mubr.bf16.mxu0 0
    %861 = vmatmul.mubr.bf16.gmra.mrb[0].mxu0 %v613
    %v862 = vpop.f32.mrb[0].mxu0
    %v863 = vadd.f32 %v650, %v862
    %v864 = vpop.f32.mrb[0].mxu0
    %v865 = vpop.f32.mrb[0].mxu0
    %v866 = vadd.f32 %v650, %v865
    %v867 = vpop.f32.mrb[0].mxu0
    %868 = vmatprep.mubr.bf16.mxu0 0
    %869 = vmatmul.mubr.bf16.gmra.mrb[0].mxu0 %v614
    %v870 = vpop.f32.mrb[0].mxu0
    %v871 = vadd.f32 %v650, %v870
    %v872 = vpop.f32.mrb[0].mxu0
    %v873 = vpop.f32.mrb[0].mxu0
    %v874 = vadd.f32 %v650, %v873
    %v875 = vpop.f32.mrb[0].mxu0
    %876 = vmatprep.mubr.bf16.mxu0 0
    %877 = vmatmul.mubr.bf16.gmra.mrb[0].mxu0 %v615
    %v878 = vpop.f32.mrb[0].mxu0
    %v879 = vadd.f32 %v650, %v878
    %v880 = vpop.f32.mrb[0].mxu0
    %v881 = vpop.f32.mrb[0].mxu0
    %v882 = vadd.f32 %v650, %v881
    %v883 = vpop.f32.mrb[0].mxu0
    %884 = vmatprep.mubr.bf16.mxu0 0
    %885 = vmatmul.mubr.bf16.gmra.mrb[0].mxu0 %v616
    %v886 = vpop.f32.mrb[0].mxu0
    %v887 = vadd.f32 %v650, %v886
    %v888 = vpop.f32.mrb[0].mxu0
    %v889 = vpop.f32.mrb[0].mxu0
    %v890 = vadd.f32 %v650, %v889
    %v891 = vpop.f32.mrb[0].mxu0
    %892 = vmatprep.mubr.bf16.mxu0 0
    %893 = vmatmul.mubr.bf16.gmra.mrb[0].mxu0 %v617
    %v894 = vpop.f32.mrb[0].mxu0
    %v895 = vadd.f32 %v650, %v894
    %v896 = vpop.f32.mrb[0].mxu0
    %v897 = vpop.f32.mrb[0].mxu0
    %v898 = vadd.f32 %v650, %v897
    %v899 = vpop.f32.mrb[0].mxu0
    %900 = vmatprep.mubr.bf16.mxu0 0
    %901 = vmatmul.mubr.bf16.gmra.mrb[0].mxu0 %v618
    %v902 = vpop.f32.mrb[0].mxu0
    %v903 = vadd.f32 %v650, %v902
    %v904 = vpop.f32.mrb[0].mxu0
    %v905 = vpop.f32.mrb[0].mxu0
    %v906 = vadd.f32 %v650, %v905
    %v907 = vpop.f32.mrb[0].mxu0
    %908 = vmatprep.mubr.bf16.mxu0 0
    %909 = vmatmul.mubr.bf16.gmra.mrb[0].mxu0 %v619
    %v910 = vpop.f32.mrb[0].mxu0
    %v911 = vadd.f32 %v650, %v910
    %v912 = vpop.f32.mrb[0].mxu0
    %v913 = vpop.f32.mrb[0].mxu0
    %v914 = vadd.f32 %v650, %v913
    %v915 = vpop.f32.mrb[0].mxu0
    %916 = vmatprep.mubr.bf16.mxu0 0
    %917 = vmatmul.mubr.bf16.gmra.mrb[0].mxu0 %v620
    %v918 = vpop.f32.mrb[0].mxu0
    %v919 = vadd.f32 %v650, %v918
    %v920 = vpop.f32.mrb[0].mxu0
    %v921 = vpop.f32.mrb[0].mxu0
    %v922 = vadd.f32 %v650, %v921
    %v923 = vpop.f32.mrb[0].mxu0
    %924 = vmatprep.mubr.bf16.mxu0 0
    %925 = vmatmul.mubr.bf16.gmra.mrb[0].mxu0 %v621
    %v926 = vpop.f32.mrb[0].mxu0
    %v927 = vadd.f32 %v650, %v926
    %v928 = vpop.f32.mrb[0].mxu0
    %v929 = vpop.f32.mrb[0].mxu0
    %v930 = vadd.f32 %v650, %v929
    %v931 = vpop.f32.mrb[0].mxu0
    %932 = vmatprep.mubr.bf16.mxu0 0
    %933 = vmatmul.mubr.bf16.gmra.mrb[0].mxu0 %v622
    %v934 = vpop.f32.mrb[0].mxu0
    %v935 = vadd.f32 %v650, %v934
    %v936 = vpop.f32.mrb[0].mxu0
    %v937 = vpop.f32.mrb[0].mxu0
    %v938 = vadd.f32 %v650, %v937
    %v939 = vpop.f32.mrb[0].mxu0
    %940 = vmatprep.mubr.bf16.mxu0 0
    %941 = vmatmul.mubr.bf16.gmra.mrb[0].mxu0 %v623
    %v942 = vpop.f32.mrb[0].mxu0
    %v943 = vadd.f32 %v650, %v942
    %v944 = vpop.f32.mrb[0].mxu0
    %v945 = vpop.f32.mrb[0].mxu0
    %v946 = vadd.f32 %v650, %v945
    %v947 = vpop.f32.mrb[0].mxu0
    %948 = vmatprep.mubr.bf16.mxu0 0
    %949 = vmatmul.mubr.bf16.gmra.mrb[0].mxu0 %v624
    %v950 = vpop.f32.mrb[0].mxu0
    %v951 = vadd.f32 %v650, %v950
    %v952 = vpop.f32.mrb[0].mxu0
    %v953 = vpop.f32.mrb[0].mxu0
    %v954 = vadd.f32 %v650, %v953
    %v955 = vpop.f32.mrb[0].mxu0
    %956 = vmatprep.mubr.bf16.mxu0 0
    %957 = vmatmul.mubr.bf16.gmra.mrb[0].mxu0 %v625
    %v958 = vpop.f32.mrb[0].mxu0
    %v959 = vadd.f32 %v650, %v958
    %v960 = vpop.f32.mrb[0].mxu0
    %v961 = vpop.f32.mrb[0].mxu0
    %v962 = vadd.f32 %v650, %v961
    %v963 = vpop.f32.mrb[0].mxu0
    %964 = vmatprep.mubr.bf16.mxu0 0
    %965 = vmatmul.mubr.bf16.gmra.mrb[0].mxu0 %v626
    %v966 = vpop.f32.mrb[0].mxu0
    %v967 = vadd.f32 %v650, %v966
    %v968 = vpop.f32.mrb[0].mxu0
    %v969 = vpop.f32.mrb[0].mxu0
    %v970 = vadd.f32 %v650, %v969
    %v971 = vpop.f32.mrb[0].mxu0
    %972 = vmatprep.mubr.bf16.mxu0 0
    %973 = vmatmul.mubr.bf16.gmra.mrb[0].mxu0 %v627
    %v974 = vpop.f32.mrb[0].mxu0
    %v975 = vadd.f32 %v650, %v974
    %v976 = vpop.f32.mrb[0].mxu0
    %v977 = vpop.f32.mrb[0].mxu0
    %v978 = vadd.f32 %v650, %v977
    %v979 = vpop.f32.mrb[0].mxu0
    %980 = vmatprep.mubr.bf16.mxu0 0
    %981 = vmatmul.mubr.bf16.gmra.mrb[0].mxu0 %v628
    %v982 = vpop.f32.mrb[0].mxu0
    %v983 = vadd.f32 %v650, %v982
    %v984 = vpop.f32.mrb[0].mxu0
    %v985 = vpop.f32.mrb[0].mxu0
    %v986 = vadd.f32 %v650, %v985
    %v987 = vpop.f32.mrb[0].mxu0
    %988 = vdwg.mxu0
    %v989 = vtanh.pop %v735
    %v990 = vtanh.pop %v738
    %v991 = vtanh.pop %v743
    %v992 = vtanh.pop %v746
    %v993 = vtanh.pop %v751
    %v994 = vtanh.pop %v754
    %v995 = vtanh.pop %v759
    %v996 = vtanh.pop %v762
    %v997 = vtanh.pop %v767
    %v998 = vtanh.pop %v770
    %v999 = vtanh.pop %v775
    %v1000 = vtanh.pop %v778
    %v1001 = vtanh.pop %v783
    %v1002 = vtanh.pop %v786
    %v1003 = vtanh.pop %v791
    %v1004 = vtanh.pop %v794
    %v1005 = vtanh.pop %v799
    %v1006 = vtanh.pop %v802
    %v1007 = vtanh.pop %v807
    %v1008 = vtanh.pop %v810
    %v1009 = vtanh.pop %v815
    %v1010 = vtanh.pop %v818
    %v1011 = vtanh.pop %v823
    %v1012 = vtanh.pop %v826
    %v1013 = vtanh.pop %v831
    %v1014 = vtanh.pop %v834
    %v1015 = vtanh.pop %v839
    %v1016 = vtanh.pop %v842
    %v1017 = vtanh.pop %v847
    %v1018 = vtanh.pop %v850
    %v1019 = vtanh.pop %v855
    %v1020 = vtanh.pop %v858
    %v1021 = vtanh.pop %v863
    %v1022 = vtanh.pop %v866
    %v1023 = vtanh.pop %v871
    %v1024 = vtanh.pop %v874
    %v1025 = vtanh.pop %v879
    %v1026 = vtanh.pop %v882
    %v1027 = vtanh.pop %v887
    %v1028 = vtanh.pop %v890
    %v1029 = vtanh.pop %v895
    %v1030 = vtanh.pop %v898
    %v1031 = vtanh.pop %v903
    %v1032 = vtanh.pop %v906
    %v1033 = vtanh.pop %v911
    %v1034 = vtanh.pop %v914
    %v1035 = vtanh.pop %v919
    %v1036 = vtanh.pop %v922
    %v1037 = vtanh.pop %v927
    %v1038 = vtanh.pop %v930
    %v1039 = vtanh.pop %v935
    %v1040 = vtanh.pop %v938
    %v1041 = vtanh.pop %v943
    %v1042 = vtanh.pop %v946
    %v1043 = vtanh.pop %v951
    %v1044 = vtanh.pop %v954
    %v1045 = vtanh.pop %v959
    %v1046 = vtanh.pop %v962
    %v1047 = vtanh.pop %v967
    %v1048 = vtanh.pop %v970
    %v1049 = vtanh.pop %v975
    %v1050 = vtanh.pop %v978
    %v1051 = vtanh.pop %v983
    %v1052 = vtanh.pop %v986
    %v1053 = vpack.c.bf16 %v990, %v989
    %v1054 = vpack.c.bf16 %v992, %v991
    %v1055 = vpack.c.bf16 %v994, %v993
    %v1056 = vpack.c.bf16 %v996, %v995
    %v1057 = vpack.c.bf16 %v998, %v997
    %v1058 = vpack.c.bf16 %v1000, %v999
    %v1059 = vpack.c.bf16 %v1002, %v1001
    %v1060 = vpack.c.bf16 %v1004, %v1003
    %v1061 = vpack.c.bf16 %v1006, %v1005
    %v1062 = vpack.c.bf16 %v1008, %v1007
    %v1063 = vpack.c.bf16 %v1010, %v1009
    %v1064 = vpack.c.bf16 %v1012, %v1011
    %v1065 = vpack.c.bf16 %v1014, %v1013
    %v1066 = vpack.c.bf16 %v1016, %v1015
    %v1067 = vpack.c.bf16 %v1018, %v1017
    %v1068 = vpack.c.bf16 %v1020, %v1019
    %v1069 = vpack.c.bf16 %v1022, %v1021
    %v1070 = vpack.c.bf16 %v1024, %v1023
    %v1071 = vpack.c.bf16 %v1026, %v1025
    %v1072 = vpack.c.bf16 %v1028, %v1027
    %v1073 = vpack.c.bf16 %v1030, %v1029
    %v1074 = vpack.c.bf16 %v1032, %v1031
    %v1075 = vpack.c.bf16 %v1034, %v1033
    %v1076 = vpack.c.bf16 %v1036, %v1035
    %v1077 = vpack.c.bf16 %v1038, %v1037
    %v1078 = vpack.c.bf16 %v1040, %v1039
    %v1079 = vpack.c.bf16 %v1042, %v1041
    %v1080 = vpack.c.bf16 %v1044, %v1043
    %v1081 = vpack.c.bf16 %v1046, %v1045
    %v1082 = vpack.c.bf16 %v1048, %v1047
    %v1083 = vpack.c.bf16 %v1050, %v1049
    %v1084 = vpack.c.bf16 %v1052, %v1051
    %v1085 = vld [vmem:[%s5] sm:$0xf]
    %v1086 = vld [vmem:[%s5 + $0x4] sm:$0xf]
    %v1087 = vld [vmem:[%s5 + $0x8] sm:$0xf]
    %v1088 = vld [vmem:[%s5 + $0xc] sm:$0xf]
    %v1089 = vld [vmem:[%s5 + $0x10] sm:$0xf]
    %v1090 = vld [vmem:[%s5 + $0x14] sm:$0xf]
    %v1091 = vld [vmem:[%s5 + $0x18] sm:$0xf]
    %v1092 = vld [vmem:[%s5 + $0x1c] sm:$0xf]
    %v1093 = vld [vmem:[%s5 + $0x20] sm:$0xf]
    %v1094 = vld [vmem:[%s5 + $0x24] sm:$0xf]
    %v1095 = vld [vmem:[%s5 + $0x28] sm:$0xf]
    %v1096 = vld [vmem:[%s5 + $0x2c] sm:$0xf]
    %v1097 = vld [vmem:[%s5 + $0x30] sm:$0xf]
    %v1098 = vld [vmem:[%s5 + $0x34] sm:$0xf]
    %v1099 = vld [vmem:[%s5 + $0x38] sm:$0xf]
    %v1100 = vld [vmem:[%s5 + $0x3c] sm:$0xf]
    %v1101 = vld [vmem:[%s6] sm:$0x1]
    %v1103 = vlaneseq
    %v1104 = vshrl.u32 %v1103, 7
    %v1105 = vsub.s32 0, %v1104
    %v1106 = vrot.slane %v1101, %v1105
    %v1124 = vunpack.c.l.b16 %v1085
    %v1125 = vunpack.c.l.b16 %v1086
    %v1126 = vunpack.c.l.b16 %v1087
    %v1127 = vunpack.c.l.b16 %v1088
    %v1128 = vunpack.c.l.b16 %v1089
    %v1129 = vunpack.c.l.b16 %v1090
    %v1130 = vunpack.c.l.b16 %v1091
    %v1131 = vunpack.c.l.b16 %v1092
    %v1132 = vunpack.c.l.b16 %v1093
    %v1133 = vunpack.c.l.b16 %v1094
    %v1134 = vunpack.c.l.b16 %v1095
    %v1135 = vunpack.c.l.b16 %v1096
    %v1136 = vunpack.c.l.b16 %v1097
    %v1137 = vunpack.c.l.b16 %v1098
    %v1138 = vunpack.c.l.b16 %v1099
    %v1139 = vunpack.c.l.b16 %v1100
    %v1140 = vpack.c.b16 %v1125, %v1124
    %v1141 = vpack.c.b16 %v1127, %v1126
    %v1142 = vpack.c.b16 %v1129, %v1128
    %v1143 = vpack.c.b16 %v1131, %v1130
    %v1144 = vpack.c.b16 %v1133, %v1132
    %v1145 = vpack.c.b16 %v1135, %v1134
    %v1146 = vpack.c.b16 %v1137, %v1136
    %v1147 = vpack.c.b16 %v1139, %v1138
    %1156 = vmatprep.subr.bf16.mxu0 0
    %1157 = vmatpush1.bf16.msra.mxu0 %v1140
    %1158 = vmatprep.subr.bf16.mxu0 0
    %1159 = vmatpush1.bf16.msra.mxu0 %v1141
    %1160 = vmatprep.subr.bf16.mxu0 0
    %1161 = vmatpush1.bf16.msra.mxu0 %v1142
    %1162 = vmatprep.subr.bf16.mxu0 0
    %1163 = vmatpush1.bf16.msra.mxu0 %v1143
    %1164 = vmatprep.subr.bf16.mxu0 0
    %1165 = vmatpush1.bf16.msra.mxu0 %v1144
    %1166 = vmatprep.subr.bf16.mxu0 0
    %1167 = vmatpush1.bf16.msra.mxu0 %v1145
    %1168 = vmatprep.subr.bf16.mxu0 0
    %1169 = vmatpush1.bf16.msra.mxu0 %v1146
    %1170 = vmatprep.subr.bf16.mxu0 0
    %1171 = vmatpush1.bf16.msra.mxu0 %v1147
    %1172 = vmatprep.subr.bf16.mxu0 0
    %1173 = vmatpush1.bf16.msra.mxu0 0
    %1174 = vmatprep.subr.bf16.mxu0 0
    %1175 = vmatpush1.bf16.msra.mxu0 0
    %1176 = vmatprep.subr.bf16.mxu0 0
    %1177 = vmatpush1.bf16.msra.mxu0 0
    %1178 = vmatprep.subr.bf16.mxu0 0
    %1179 = vmatpush1.bf16.msra.mxu0 0
    %1180 = vmatprep.subr.bf16.mxu0 0
    %1181 = vmatpush1.bf16.msra.mxu0 0
    %1182 = vmatprep.subr.bf16.mxu0 0
    %1183 = vmatpush1.bf16.msra.mxu0 0
    %1184 = vmatprep.subr.bf16.mxu0 0
    %1185 = vmatpush1.bf16.msra.mxu0 0
    %1186 = vmatprep.subr.bf16.mxu0 0
    %1187 = vmatpush1.bf16.msra.mxu0 0
    %1188 = vmatprep.mubr.bf16.mxu0 0
    %1189 = vmatmul.mubr.bf16.gmra.mrb[0].mxu0 %v1053
    %v1190 = vpop.f32.mrb[0].mxu0
    %v1191 = vadd.f32 %v1106, %v1190
    %v1192 = vpop.f32.mrb[0].mxu0
    %v1193 = vpop.f32.mrb[0].mxu0
    %v1194 = vadd.f32 %v1106, %v1193
    %v1195 = vpop.f32.mrb[0].mxu0
    %1196 = vmatprep.mubr.bf16.mxu0 0
    %1197 = vmatmul.mubr.bf16.gmra.mrb[0].mxu0 %v1054
    %v1198 = vpop.f32.mrb[0].mxu0
    %v1199 = vadd.f32 %v1106, %v1198
    %v1200 = vpop.f32.mrb[0].mxu0
    %v1201 = vpop.f32.mrb[0].mxu0
    %v1202 = vadd.f32 %v1106, %v1201
    %v1203 = vpop.f32.mrb[0].mxu0
    %1204 = vmatprep.mubr.bf16.mxu0 0
    %1205 = vmatmul.mubr.bf16.gmra.mrb[0].mxu0 %v1055
    %v1206 = vpop.f32.mrb[0].mxu0
    %v1207 = vadd.f32 %v1106, %v1206
    %v1208 = vpop.f32.mrb[0].mxu0
    %v1209 = vpop.f32.mrb[0].mxu0
    %v1210 = vadd.f32 %v1106, %v1209
    %v1211 = vpop.f32.mrb[0].mxu0
    %1212 = vmatprep.mubr.bf16.mxu0 0
    %1213 = vmatmul.mubr.bf16.gmra.mrb[0].mxu0 %v1056
    %v1214 = vpop.f32.mrb[0].mxu0
    %v1215 = vadd.f32 %v1106, %v1214
    %v1216 = vpop.f32.mrb[0].mxu0
    %v1217 = vpop.f32.mrb[0].mxu0
    %v1218 = vadd.f32 %v1106, %v1217
    %v1219 = vpop.f32.mrb[0].mxu0
    %1220 = vmatprep.mubr.bf16.mxu0 0
    %1221 = vmatmul.mubr.bf16.gmra.mrb[0].mxu0 %v1057
    %v1222 = vpop.f32.mrb[0].mxu0
    %v1223 = vadd.f32 %v1106, %v1222
    %v1224 = vpop.f32.mrb[0].mxu0
    %v1225 = vpop.f32.mrb[0].mxu0
    %v1226 = vadd.f32 %v1106, %v1225
    %v1227 = vpop.f32.mrb[0].mxu0
    %1228 = vmatprep.mubr.bf16.mxu0 0
    %1229 = vmatmul.mubr.bf16.gmra.mrb[0].mxu0 %v1058
    %v1230 = vpop.f32.mrb[0].mxu0
    %v1231 = vadd.f32 %v1106, %v1230
    %v1232 = vpop.f32.mrb[0].mxu0
    %v1233 = vpop.f32.mrb[0].mxu0
    %v1234 = vadd.f32 %v1106, %v1233
    %v1235 = vpop.f32.mrb[0].mxu0
    %1236 = vmatprep.mubr.bf16.mxu0 0
    %1237 = vmatmul.mubr.bf16.gmra.mrb[0].mxu0 %v1059
    %v1238 = vpop.f32.mrb[0].mxu0
    %v1239 = vadd.f32 %v1106, %v1238
    %v1240 = vpop.f32.mrb[0].mxu0
    %v1241 = vpop.f32.mrb[0].mxu0
    %v1242 = vadd.f32 %v1106, %v1241
    %v1243 = vpop.f32.mrb[0].mxu0
    %1244 = vmatprep.mubr.bf16.mxu0 0
    %1245 = vmatmul.mubr.bf16.gmra.mrb[0].mxu0 %v1060
    %v1246 = vpop.f32.mrb[0].mxu0
    %v1247 = vadd.f32 %v1106, %v1246
    %v1248 = vpop.f32.mrb[0].mxu0
    %v1249 = vpop.f32.mrb[0].mxu0
    %v1250 = vadd.f32 %v1106, %v1249
    %v1251 = vpop.f32.mrb[0].mxu0
    %1252 = vmatprep.mubr.bf16.mxu0 0
    %1253 = vmatmul.mubr.bf16.gmra.mrb[0].mxu0 %v1061
    %v1254 = vpop.f32.mrb[0].mxu0
    %v1255 = vadd.f32 %v1106, %v1254
    %v1256 = vpop.f32.mrb[0].mxu0
    %v1257 = vpop.f32.mrb[0].mxu0
    %v1258 = vadd.f32 %v1106, %v1257
    %v1259 = vpop.f32.mrb[0].mxu0
    %1260 = vmatprep.mubr.bf16.mxu0 0
    %1261 = vmatmul.mubr.bf16.gmra.mrb[0].mxu0 %v1062
    %v1262 = vpop.f32.mrb[0].mxu0
    %v1263 = vadd.f32 %v1106, %v1262
    %v1264 = vpop.f32.mrb[0].mxu0
    %v1265 = vpop.f32.mrb[0].mxu0
    %v1266 = vadd.f32 %v1106, %v1265
    %v1267 = vpop.f32.mrb[0].mxu0
    %1268 = vmatprep.mubr.bf16.mxu0 0
    %1269 = vmatmul.mubr.bf16.gmra.mrb[0].mxu0 %v1063
    %v1270 = vpop.f32.mrb[0].mxu0
    %v1271 = vadd.f32 %v1106, %v1270
    %v1272 = vpop.f32.mrb[0].mxu0
    %v1273 = vpop.f32.mrb[0].mxu0
    %v1274 = vadd.f32 %v1106, %v1273
    %v1275 = vpop.f32.mrb[0].mxu0
    %1276 = vmatprep.mubr.bf16.mxu0 0
    %1277 = vmatmul.mubr.bf16.gmra.mrb[0].mxu0 %v1064
    %v1278 = vpop.f32.mrb[0].mxu0
    %v1279 = vadd.f32 %v1106, %v1278
    %v1280 = vpop.f32.mrb[0].mxu0
    %v1281 = vpop.f32.mrb[0].mxu0
    %v1282 = vadd.f32 %v1106, %v1281
    %v1283 = vpop.f32.mrb[0].mxu0
    %1284 = vmatprep.mubr.bf16.mxu0 0
    %1285 = vmatmul.mubr.bf16.gmra.mrb[0].mxu0 %v1065
    %v1286 = vpop.f32.mrb[0].mxu0
    %v1287 = vadd.f32 %v1106, %v1286
    %v1288 = vpop.f32.mrb[0].mxu0
    %v1289 = vpop.f32.mrb[0].mxu0
    %v1290 = vadd.f32 %v1106, %v1289
    %v1291 = vpop.f32.mrb[0].mxu0
    %1292 = vmatprep.mubr.bf16.mxu0 0
    %1293 = vmatmul.mubr.bf16.gmra.mrb[0].mxu0 %v1066
    %v1294 = vpop.f32.mrb[0].mxu0
    %v1295 = vadd.f32 %v1106, %v1294
    %v1296 = vpop.f32.mrb[0].mxu0
    %v1297 = vpop.f32.mrb[0].mxu0
    %v1298 = vadd.f32 %v1106, %v1297
    %v1299 = vpop.f32.mrb[0].mxu0
    %1300 = vmatprep.mubr.bf16.mxu0 0
    %1301 = vmatmul.mubr.bf16.gmra.mrb[0].mxu0 %v1067
    %v1302 = vpop.f32.mrb[0].mxu0
    %v1303 = vadd.f32 %v1106, %v1302
    %v1304 = vpop.f32.mrb[0].mxu0
    %v1305 = vpop.f32.mrb[0].mxu0
    %v1306 = vadd.f32 %v1106, %v1305
    %v1307 = vpop.f32.mrb[0].mxu0
    %1308 = vmatprep.mubr.bf16.mxu0 0
    %1309 = vmatmul.mubr.bf16.gmra.mrb[0].mxu0 %v1068
    %v1310 = vpop.f32.mrb[0].mxu0
    %v1311 = vadd.f32 %v1106, %v1310
    %v1312 = vpop.f32.mrb[0].mxu0
    %v1313 = vpop.f32.mrb[0].mxu0
    %v1314 = vadd.f32 %v1106, %v1313
    %v1315 = vpop.f32.mrb[0].mxu0
    %1316 = vmatprep.mubr.bf16.mxu0 0
    %1317 = vmatmul.mubr.bf16.gmra.mrb[0].mxu0 %v1069
    %v1318 = vpop.f32.mrb[0].mxu0
    %v1319 = vadd.f32 %v1106, %v1318
    %v1320 = vpop.f32.mrb[0].mxu0
    %v1321 = vpop.f32.mrb[0].mxu0
    %v1322 = vadd.f32 %v1106, %v1321
    %v1323 = vpop.f32.mrb[0].mxu0
    %1324 = vmatprep.mubr.bf16.mxu0 0
    %1325 = vmatmul.mubr.bf16.gmra.mrb[0].mxu0 %v1070
    %v1326 = vpop.f32.mrb[0].mxu0
    %v1327 = vadd.f32 %v1106, %v1326
    %v1328 = vpop.f32.mrb[0].mxu0
    %v1329 = vpop.f32.mrb[0].mxu0
    %v1330 = vadd.f32 %v1106, %v1329
    %v1331 = vpop.f32.mrb[0].mxu0
    %1332 = vmatprep.mubr.bf16.mxu0 0
    %1333 = vmatmul.mubr.bf16.gmra.mrb[0].mxu0 %v1071
    %v1334 = vpop.f32.mrb[0].mxu0
    %v1335 = vadd.f32 %v1106, %v1334
    %v1336 = vpop.f32.mrb[0].mxu0
    %v1337 = vpop.f32.mrb[0].mxu0
    %v1338 = vadd.f32 %v1106, %v1337
    %v1339 = vpop.f32.mrb[0].mxu0
    %1340 = vmatprep.mubr.bf16.mxu0 0
    %1341 = vmatmul.mubr.bf16.gmra.mrb[0].mxu0 %v1072
    %v1342 = vpop.f32.mrb[0].mxu0
    %v1343 = vadd.f32 %v1106, %v1342
    %v1344 = vpop.f32.mrb[0].mxu0
    %v1345 = vpop.f32.mrb[0].mxu0
    %v1346 = vadd.f32 %v1106, %v1345
    %v1347 = vpop.f32.mrb[0].mxu0
    %1348 = vmatprep.mubr.bf16.mxu0 0
    %1349 = vmatmul.mubr.bf16.gmra.mrb[0].mxu0 %v1073
    %v1350 = vpop.f32.mrb[0].mxu0
    %v1351 = vadd.f32 %v1106, %v1350
    %v1352 = vpop.f32.mrb[0].mxu0
    %v1353 = vpop.f32.mrb[0].mxu0
    %v1354 = vadd.f32 %v1106, %v1353
    %v1355 = vpop.f32.mrb[0].mxu0
    %1356 = vmatprep.mubr.bf16.mxu0 0
    %1357 = vmatmul.mubr.bf16.gmra.mrb[0].mxu0 %v1074
    %v1358 = vpop.f32.mrb[0].mxu0
    %v1359 = vadd.f32 %v1106, %v1358
    %v1360 = vpop.f32.mrb[0].mxu0
    %v1361 = vpop.f32.mrb[0].mxu0
    %v1362 = vadd.f32 %v1106, %v1361
    %v1363 = vpop.f32.mrb[0].mxu0
    %1364 = vmatprep.mubr.bf16.mxu0 0
    %1365 = vmatmul.mubr.bf16.gmra.mrb[0].mxu0 %v1075
    %v1366 = vpop.f32.mrb[0].mxu0
    %v1367 = vadd.f32 %v1106, %v1366
    %v1368 = vpop.f32.mrb[0].mxu0
    %v1369 = vpop.f32.mrb[0].mxu0
    %v1370 = vadd.f32 %v1106, %v1369
    %v1371 = vpop.f32.mrb[0].mxu0
    %1372 = vmatprep.mubr.bf16.mxu0 0
    %1373 = vmatmul.mubr.bf16.gmra.mrb[0].mxu0 %v1076
    %v1374 = vpop.f32.mrb[0].mxu0
    %v1375 = vadd.f32 %v1106, %v1374
    %v1376 = vpop.f32.mrb[0].mxu0
    %v1377 = vpop.f32.mrb[0].mxu0
    %v1378 = vadd.f32 %v1106, %v1377
    %v1379 = vpop.f32.mrb[0].mxu0
    %1380 = vmatprep.mubr.bf16.mxu0 0
    %1381 = vmatmul.mubr.bf16.gmra.mrb[0].mxu0 %v1077
    %v1382 = vpop.f32.mrb[0].mxu0
    %v1383 = vadd.f32 %v1106, %v1382
    %v1384 = vpop.f32.mrb[0].mxu0
    %v1385 = vpop.f32.mrb[0].mxu0
    %v1386 = vadd.f32 %v1106, %v1385
    %v1387 = vpop.f32.mrb[0].mxu0
    %1388 = vmatprep.mubr.bf16.mxu0 0
    %1389 = vmatmul.mubr.bf16.gmra.mrb[0].mxu0 %v1078
    %v1390 = vpop.f32.mrb[0].mxu0
    %v1391 = vadd.f32 %v1106, %v1390
    %v1392 = vpop.f32.mrb[0].mxu0
    %v1393 = vpop.f32.mrb[0].mxu0
    %v1394 = vadd.f32 %v1106, %v1393
    %v1395 = vpop.f32.mrb[0].mxu0
    %1396 = vmatprep.mubr.bf16.mxu0 0
    %1397 = vmatmul.mubr.bf16.gmra.mrb[0].mxu0 %v1079
    %v1398 = vpop.f32.mrb[0].mxu0
    %v1399 = vadd.f32 %v1106, %v1398
    %v1400 = vpop.f32.mrb[0].mxu0
    %v1401 = vpop.f32.mrb[0].mxu0
    %v1402 = vadd.f32 %v1106, %v1401
    %v1403 = vpop.f32.mrb[0].mxu0
    %1404 = vmatprep.mubr.bf16.mxu0 0
    %1405 = vmatmul.mubr.bf16.gmra.mrb[0].mxu0 %v1080
    %v1406 = vpop.f32.mrb[0].mxu0
    %v1407 = vadd.f32 %v1106, %v1406
    %v1408 = vpop.f32.mrb[0].mxu0
    %v1409 = vpop.f32.mrb[0].mxu0
    %v1410 = vadd.f32 %v1106, %v1409
    %v1411 = vpop.f32.mrb[0].mxu0
    %1412 = vmatprep.mubr.bf16.mxu0 0
    %1413 = vmatmul.mubr.bf16.gmra.mrb[0].mxu0 %v1081
    %v1414 = vpop.f32.mrb[0].mxu0
    %v1415 = vadd.f32 %v1106, %v1414
    %v1416 = vpop.f32.mrb[0].mxu0
    %v1417 = vpop.f32.mrb[0].mxu0
    %v1418 = vadd.f32 %v1106, %v1417
    %v1419 = vpop.f32.mrb[0].mxu0
    %1420 = vmatprep.mubr.bf16.mxu0 0
    %1421 = vmatmul.mubr.bf16.gmra.mrb[0].mxu0 %v1082
    %v1422 = vpop.f32.mrb[0].mxu0
    %v1423 = vadd.f32 %v1106, %v1422
    %v1424 = vpop.f32.mrb[0].mxu0
    %v1425 = vpop.f32.mrb[0].mxu0
    %v1426 = vadd.f32 %v1106, %v1425
    %v1427 = vpop.f32.mrb[0].mxu0
    %1428 = vmatprep.mubr.bf16.mxu0 0
    %1429 = vmatmul.mubr.bf16.gmra.mrb[0].mxu0 %v1083
    %v1430 = vpop.f32.mrb[0].mxu0
    %v1431 = vadd.f32 %v1106, %v1430
    %v1432 = vpop.f32.mrb[0].mxu0
    %v1433 = vpop.f32.mrb[0].mxu0
    %v1434 = vadd.f32 %v1106, %v1433
    %v1435 = vpop.f32.mrb[0].mxu0
    %1436 = vmatprep.mubr.bf16.mxu0 0
    %1437 = vmatmul.mubr.bf16.gmra.mrb[0].mxu0 %v1084
    %v1438 = vpop.f32.mrb[0].mxu0
    %v1439 = vadd.f32 %v1106, %v1438
    %v1440 = vpop.f32.mrb[0].mxu0
    %v1441 = vpop.f32.mrb[0].mxu0
    %v1442 = vadd.f32 %v1106, %v1441
    %v1443 = vpop.f32.mrb[0].mxu0
    %1444 = vdwg.mxu0
    %v1445 = vtanh.pop %v1191
    %v1446 = vtanh.pop %v1194
    %v1447 = vtanh.pop %v1199
    %v1448 = vtanh.pop %v1202
    %v1449 = vtanh.pop %v1207
    %v1450 = vtanh.pop %v1210
    %v1451 = vtanh.pop %v1215
    %v1452 = vtanh.pop %v1218
    %v1453 = vtanh.pop %v1223
    %v1454 = vtanh.pop %v1226
    %v1455 = vtanh.pop %v1231
    %v1456 = vtanh.pop %v1234
    %v1457 = vtanh.pop %v1239
    %v1458 = vtanh.pop %v1242
    %v1459 = vtanh.pop %v1247
    %v1460 = vtanh.pop %v1250
    %v1461 = vtanh.pop %v1255
    %v1462 = vtanh.pop %v1258
    %v1463 = vtanh.pop %v1263
    %v1464 = vtanh.pop %v1266
    %v1465 = vtanh.pop %v1271
    %v1466 = vtanh.pop %v1274
    %v1467 = vtanh.pop %v1279
    %v1468 = vtanh.pop %v1282
    %v1469 = vtanh.pop %v1287
    %v1470 = vtanh.pop %v1290
    %v1471 = vtanh.pop %v1295
    %v1472 = vtanh.pop %v1298
    %v1473 = vtanh.pop %v1303
    %v1474 = vtanh.pop %v1306
    %v1475 = vtanh.pop %v1311
    %v1476 = vtanh.pop %v1314
    %v1477 = vtanh.pop %v1319
    %v1478 = vtanh.pop %v1322
    %v1479 = vtanh.pop %v1327
    %v1480 = vtanh.pop %v1330
    %v1481 = vtanh.pop %v1335
    %v1482 = vtanh.pop %v1338
    %v1483 = vtanh.pop %v1343
    %v1484 = vtanh.pop %v1346
    %v1485 = vtanh.pop %v1351
    %v1486 = vtanh.pop %v1354
    %v1487 = vtanh.pop %v1359
    %v1488 = vtanh.pop %v1362
    %v1489 = vtanh.pop %v1367
    %v1490 = vtanh.pop %v1370
    %v1491 = vtanh.pop %v1375
    %v1492 = vtanh.pop %v1378
    %v1493 = vtanh.pop %v1383
    %v1494 = vtanh.pop %v1386
    %v1495 = vtanh.pop %v1391
    %v1496 = vtanh.pop %v1394
    %v1497 = vtanh.pop %v1399
    %v1498 = vtanh.pop %v1402
    %v1499 = vtanh.pop %v1407
    %v1500 = vtanh.pop %v1410
    %v1501 = vtanh.pop %v1415
    %v1502 = vtanh.pop %v1418
    %v1503 = vtanh.pop %v1423
    %v1504 = vtanh.pop %v1426
    %v1505 = vtanh.pop %v1431
    %v1506 = vtanh.pop %v1434
    %v1507 = vtanh.pop %v1439
    %v1508 = vtanh.pop %v1442
    %1509 = vst [vmem:[#allocation2] sm:$0xff] %v1445
    %1510 = vst [vmem:[#allocation2 + $0x8] sm:$0xff] %v1446
    %1511 = vst [vmem:[#allocation2 + $0x10] sm:$0xff] %v1447
    %1512 = vst [vmem:[#allocation2 + $0x18] sm:$0xff] %v1448
    %1513 = vst [vmem:[#allocation2 + $0x20] sm:$0xff] %v1449
    %1514 = vst [vmem:[#allocation2 + $0x28] sm:$0xff] %v1450
    %1515 = vst [vmem:[#allocation2 + $0x30] sm:$0xff] %v1451
    %1516 = vst [vmem:[#allocation2 + $0x38] sm:$0xff] %v1452
    %1517 = vst [vmem:[#allocation2 + $0x40] sm:$0xff] %v1453
    %1518 = vst [vmem:[#allocation2 + $0x48] sm:$0xff] %v1454
    %1519 = vst [vmem:[#allocation2 + $0x50] sm:$0xff] %v1455
    %1520 = vst [vmem:[#allocation2 + $0x58] sm:$0xff] %v1456
    %1521 = vst [vmem:[#allocation2 + $0x60] sm:$0xff] %v1457
    %1522 = vst [vmem:[#allocation2 + $0x68] sm:$0xff] %v1458
    %1523 = vst [vmem:[#allocation2 + $0x70] sm:$0xff] %v1459
    %1524 = vst [vmem:[#allocation2 + $0x78] sm:$0xff] %v1460
    %1525 = vst [vmem:[#allocation2 + $0x80] sm:$0xff] %v1461
    %1526 = vst [vmem:[#allocation2 + $0x88] sm:$0xff] %v1462
    %1527 = vst [vmem:[#allocation2 + $0x90] sm:$0xff] %v1463
    %1528 = vst [vmem:[#allocation2 + $0x98] sm:$0xff] %v1464
    %1529 = vst [vmem:[#allocation2 + $0xa0] sm:$0xff] %v1465
    %1530 = vst [vmem:[#allocation2 + $0xa8] sm:$0xff] %v1466
    %1531 = vst [vmem:[#allocation2 + $0xb0] sm:$0xff] %v1467
    %1532 = vst [vmem:[#allocation2 + $0xb8] sm:$0xff] %v1468
    %1533 = vst [vmem:[#allocation2 + $0xc0] sm:$0xff] %v1469
    %1534 = vst [vmem:[#allocation2 + $0xc8] sm:$0xff] %v1470
    %1535 = vst [vmem:[#allocation2 + $0xd0] sm:$0xff] %v1471
    %1536 = vst [vmem:[#allocation2 + $0xd8] sm:$0xff] %v1472
    %1537 = vst [vmem:[#allocation2 + $0xe0] sm:$0xff] %v1473
    %1538 = vst [vmem:[#allocation2 + $0xe8] sm:$0xff] %v1474
    %1539 = vst [vmem:[#allocation2 + $0xf0] sm:$0xff] %v1475
    %1540 = vst [vmem:[#allocation2 + $0xf8] sm:$0xff] %v1476
    %1541 = vst [vmem:[#allocation2 + $0x100] sm:$0xff] %v1477
    %1542 = vst [vmem:[#allocation2 + $0x108] sm:$0xff] %v1478
    %1543 = vst [vmem:[#allocation2 + $0x110] sm:$0xff] %v1479
    %1544 = vst [vmem:[#allocation2 + $0x118] sm:$0xff] %v1480
    %1545 = vst [vmem:[#allocation2 + $0x120] sm:$0xff] %v1481
    %1546 = vst [vmem:[#allocation2 + $0x128] sm:$0xff] %v1482
    %1547 = vst [vmem:[#allocation2 + $0x130] sm:$0xff] %v1483
    %1548 = vst [vmem:[#allocation2 + $0x138] sm:$0xff] %v1484
    %1549 = vst [vmem:[#allocation2 + $0x140] sm:$0xff] %v1485
    %1550 = vst [vmem:[#allocation2 + $0x148] sm:$0xff] %v1486
    %1551 = vst [vmem:[#allocation2 + $0x150] sm:$0xff] %v1487
    %1552 = vst [vmem:[#allocation2 + $0x158] sm:$0xff] %v1488
    %1553 = vst [vmem:[#allocation2 + $0x160] sm:$0xff] %v1489
    %1554 = vst [vmem:[#allocation2 + $0x168] sm:$0xff] %v1490
    %1555 = vst [vmem:[#allocation2 + $0x170] sm:$0xff] %v1491
    %1556 = vst [vmem:[#allocation2 + $0x178] sm:$0xff] %v1492
    %1557 = vst [vmem:[#allocation2 + $0x180] sm:$0xff] %v1493
    %1558 = vst [vmem:[#allocation2 + $0x188] sm:$0xff] %v1494
    %1559 = vst [vmem:[#allocation2 + $0x190] sm:$0xff] %v1495
    %1560 = vst [vmem:[#allocation2 + $0x198] sm:$0xff] %v1496
    %1561 = vst [vmem:[#allocation2 + $0x1a0] sm:$0xff] %v1497
    %1562 = vst [vmem:[#allocation2 + $0x1a8] sm:$0xff] %v1498
    %1563 = vst [vmem:[#allocation2 + $0x1b0] sm:$0xff] %v1499
    %1564 = vst [vmem:[#allocation2 + $0x1b8] sm:$0xff] %v1500
    %1565 = vst [vmem:[#allocation2 + $0x1c0] sm:$0xff] %v1501
    %1566 = vst [vmem:[#allocation2 + $0x1c8] sm:$0xff] %v1502
    %1567 = vst [vmem:[#allocation2 + $0x1d0] sm:$0xff] %v1503
    %1568 = vst [vmem:[#allocation2 + $0x1d8] sm:$0xff] %v1504
    %1569 = vst [vmem:[#allocation2 + $0x1e0] sm:$0xff] %v1505
    %1570 = vst [vmem:[#allocation2 + $0x1e8] sm:$0xff] %v1506
    %1571 = vst [vmem:[#allocation2 + $0x1f0] sm:$0xff] %v1507
    %1572 = vst [vmem:[#allocation2 + $0x1f8] sm:$0xff] %v1508
    // Predicated region
    $region30: #{tpu_custom_call.1} parent=1 // pred_check
      _
    $region31: #{tpu_custom_call.1} parent=1 // pred_check_branch
      %1574 = sbr.rel (0) target = $region33
    $region32: #{tpu_custom_call.1} parent=1 // pred_region
      %s1576 = ssub.s32 8192, 8192
      %1577 = vsyncadd [#allocation3], %s1576
      %s1578 = sshll.u32 [#allocation2], 4
      %s1579 = int_to_ptr.vmem [resolvable:$true] %s1578
      %1584 = dma.vmem_to_hbm [thread:$0]  %s1579, 8192, %s7, [#allocation3], 128, 128, 8
    $region33: #{tpu_custom_call.1} parent=1 // pred_fallthru
      _
    // Predicated region
    $region34: #{tpu_custom_call.1} parent=1 // pred_check
      _
    $region35: #{tpu_custom_call.1} parent=1 // pred_check_branch
      %1586 = sbr.rel (0) target = $region37
    $region36: #{tpu_custom_call.1} parent=1 // pred_region
      %1587 = dma.done [#allocation3], 8192
    $region37: #{tpu_custom_call.1} parent=1 // pred_fallthru
      _
    %1588 = vsyncpa [#allocation3], 1

</llo_original>
